<compile_context>
chip_gen: v7x
topology: tpu7x:2x2x1
jax: 0.10.0
libtpu: 0.0.40
codegen_flags: <defaults>
</compile_context>

<pallas_src>
import functools
import math

import jax
import jax.numpy as jnp
import numpy as np
from jax.experimental import pallas as pl
from jax.experimental.pallas import tpu as pltpu

LN_EPS = 1e-5


# ----------------------------------------------------------------------------
# Kernel body factory
# ----------------------------------------------------------------------------
def _make_kernel(*, heads, activation, has_mask, prefetch_w):
    def kernel(*refs):
        idx = 0
        x_ref = refs[idx]; idx += 1
        mask_ref = None
        if has_mask:
            mask_ref = refs[idx]; idx += 1
        (ln1g, ln1b, wqkv, bqkv, wo, bo, ln2g, ln2b,
         w1, b1, w2, b2) = refs[idx:idx + 12]
        idx += 12
        o_ref = refs[idx]; idx += 1
        qkv_scr = refs[idx]; attn_scr = refs[idx + 1]; idx += 2
        if prefetch_w:
            w1_vmem, w2_vmem, sem = refs[idx:idx + 3]

        x = x_ref[0].astype(jnp.float32)          # (S, D)
        S, D = x.shape
        dh = D // heads

        # Kick off the MLP-weight DMA early so it overlaps the attention phase
        # (only built for B == 1, so no cross-core / cross-step hazards).
        if prefetch_w:
            w1_copy = pltpu.make_async_copy(w1, w1_vmem, sem.at[0])
            w2_copy = pltpu.make_async_copy(w2, w2_vmem, sem.at[1])
            w1_copy.start()
            w2_copy.start()

        def layer_norm(h, g_ref, b_ref):          # f32 math, one-pass stats
            g = g_ref[0]
            b = b_ref[0]
            mu = jnp.mean(h, axis=-1, keepdims=True)
            ms = jnp.mean(h * h, axis=-1, keepdims=True)
            var = ms - mu * mu
            return (h - mu) * jax.lax.rsqrt(var + LN_EPS) * g + b

        # ---- attention branch ------------------------------------------------
        xn = layer_norm(x, ln1g, ln1b).astype(jnp.bfloat16)
        # Fused QKV: one wide MXU matmul; 1/sqrt(dh) already folded into wq/bq.
        qkv = jnp.dot(xn, wqkv[...], preferred_element_type=jnp.float32) + bqkv[0]
        # Stage bf16 qkv in VMEM; per-head operands are loaded from here so no
        # full q/k/v values stay live in vregs across the head loop.
        qkv_scr[...] = qkv.astype(jnp.bfloat16)

        if has_mask:
            mask = mask_ref[...]                  # (S, S) additive, f32

        for h in range(heads):                    # heads is a small static int
            lo = h * dh
            qh = qkv_scr[:, lo:lo + dh]
            kh = qkv_scr[:, D + lo:D + lo + dh]
            vh = qkv_scr[:, 2 * D + lo:2 * D + lo + dh]
            # q @ k^T without explicit transpose: contract axis 1 of both.
            s = jax.lax.dot_general(qh, kh, (((1,), (1,)), ((), ())),
                                    preferred_element_type=jnp.float32)
            if has_mask:
                s = s + mask
            m = jnp.max(s, axis=-1, keepdims=True)
            p = jnp.exp(s - m)
            l = jnp.sum(p, axis=-1, keepdims=True)
            # Deferred normalization: scale the (S, dh) accumulator, not (S, S).
            oh = jnp.dot(p.astype(jnp.bfloat16), vh,
                         preferred_element_type=jnp.float32)
            oh = oh * pl.reciprocal(l, approx=True)
            attn_scr[:, lo:lo + dh] = oh.astype(jnp.bfloat16)

        attn = jnp.dot(attn_scr[...], wo[...],
                       preferred_element_type=jnp.float32) + bo[0]
        x1 = x + attn                             # torch: x += self_attn(ln1(x))

        # ---- MLP branch -------------------------------------------------------
        x2n = layer_norm(x1, ln2g, ln2b).astype(jnp.bfloat16)

        if prefetch_w:
            w1_copy.wait()
            w1_mat = w1_vmem[...]
        else:
            w1_mat = w1[...]
        hdn = jnp.dot(x2n, w1_mat, preferred_element_type=jnp.float32) + b1[0]
        if activation == "quick_gelu":
            hdn = hdn * jax.nn.sigmoid(1.702 * hdn)
        else:                                     # exact GELU (torch.nn.GELU default)
            hdn = jax.nn.gelu(hdn, approximate=False)

        if prefetch_w:
            w2_copy.wait()
            w2_mat = w2_vmem[...]
        else:
            w2_mat = w2[...]
        mlp = jnp.dot(hdn.astype(jnp.bfloat16), w2_mat,
                      preferred_element_type=jnp.float32) + b2[0]

        o_ref[0] = (x1 + mlp).astype(o_ref.dtype)

    return kernel


# ----------------------------------------------------------------------------
# Build / cache the pallas_call
# ----------------------------------------------------------------------------
def _vmem_capacity_bytes():
    try:
        info = pltpu.get_tpu_info()
        for attr in ("vmem_capacity_bytes", "vmem_size_bytes", "vmem_bytes"):
            v = getattr(info, attr, None)
            if v:
                return int(v)
    except Exception:
        pass
    return 64 << 20  # conservative default (v7x per-TensorCore)


@functools.lru_cache(maxsize=None)
def _build_clip_call(B, S, D, F, heads, has_mask, activation, x_dtype_name,
                     prefetch_w):
    x_dtype = jnp.dtype(x_dtype_name)
    bf16 = jnp.bfloat16
    dh = D // heads

    kernel = _make_kernel(heads=heads, activation=activation,
                          has_mask=has_mask, prefetch_w=prefetch_w)

    def const_spec(shape):
        ndim = len(shape)
        return pl.BlockSpec(shape, lambda b, _n=ndim: (0,) * _n)

    in_specs = [pl.BlockSpec((1, S, D), lambda b: (b, 0, 0))]
    if has_mask:
        in_specs.append(const_spec((S, S)))
    in_specs += [const_spec((1, D)), const_spec((1, D)),        # ln1 g/b
                 const_spec((D, 3 * D)), const_spec((1, 3 * D)),  # wqkv / bqkv
                 const_spec((D, D)), const_spec((1, D)),          # wo / bo
                 const_spec((1, D)), const_spec((1, D))]          # ln2 g/b
    if prefetch_w:
        in_specs += [pl.BlockSpec(memory_space=pl.ANY), const_spec((1, F)),
                     pl.BlockSpec(memory_space=pl.ANY), const_spec((1, D))]
    else:
        in_specs += [const_spec((D, F)), const_spec((1, F)),
                     const_spec((F, D)), const_spec((1, D))]

    scratch_shapes = [pltpu.VMEM((S, 3 * D), bf16),   # staged qkv
                      pltpu.VMEM((S, D), bf16)]       # head outputs
    if prefetch_w:
        scratch_shapes += [pltpu.VMEM((D, F), bf16),
                           pltpu.VMEM((F, D), bf16),
                           pltpu.SemaphoreType.DMA((2,))]

    # ---- VMEM budget (generation aware) -------------------------------------
    itemsz = x_dtype.itemsize
    io_bytes = 2 * 2 * S * D * itemsz                       # x + out, double buffered
    wb = (D * 3 * D + D * D) * 2                            # wqkv + wo (bf16)
    if not prefetch_w:
        wb += (D * F + F * D) * 2                           # w1 + w2 (bf16)
    vec = (4 * D + 3 * D + D + F + D) * 4                   # LN rows + biases (f32)
    mask_b = S * S * 4 if has_mask else 0
    const_bytes = 2 * (wb + vec + mask_b)                   # pipeline double-buffers
    scratch_bytes = S * 3 * D * 2 + S * D * 2
    if prefetch_w:
        scratch_bytes += (D * F + F * D) * 2
    vmem_need = io_bytes + const_bytes + scratch_bytes + (8 << 20)
    cap = _vmem_capacity_bytes()
    vmem_limit = int(min(max(vmem_need, 32 << 20), max(cap - (2 << 20), 16 << 20)))

    # ---- cost estimate -------------------------------------------------------
    matmul_flops = 2 * B * S * (D * 3 * D + D * D + 2 * D * F)
    attn_flops = 4 * B * heads * S * S * dh
    weight_bytes = (D * 3 * D + D * D + D * F + F * D) * 2 + vec + mask_b
    cost = pl.CostEstimate(
        flops=int(matmul_flops + attn_flops),
        transcendentals=int(B * S * (heads * S + F)),
        bytes_accessed=int(2 * B * S * D * itemsz + weight_bytes),
    )

    return pl.pallas_call(
        kernel,
        out_shape=jax.ShapeDtypeStruct((B, S, D), x_dtype),
        grid_spec=pltpu.PrefetchScalarGridSpec(
            num_scalar_prefetch=0,
            grid=(B,),
            in_specs=in_specs,
            out_specs=pl.BlockSpec((1, S, D), lambda b: (b, 0, 0)),
            scratch_shapes=scratch_shapes,
        ),
        compiler_params=pltpu.CompilerParams(
            dimension_semantics=("parallel",),
            vmem_limit_bytes=vmem_limit,
        ),
        cost_estimate=cost,
    )


# ----------------------------------------------------------------------------
# Host-side weight prep (do once per layer, outside the per-call path)
# ----------------------------------------------------------------------------
def prepare_clip_params(params, heads):
    D = params["wq"].shape[0]
    assert D % heads == 0, "embed_dim must be divisible by heads"
    scale = 1.0 / math.sqrt(D // heads)
    bf16, f32 = jnp.bfloat16, jnp.float32
    # Fold 1/sqrt(dh) into the Q column block (weights stored as y = x @ W + b).
    wqkv = jnp.concatenate([params["wq"] * scale, params["wk"], params["wv"]],
                           axis=1).astype(bf16)
    bqkv = jnp.concatenate([params["bq"] * scale, params["bk"], params["bv"]]
                           ).reshape(1, -1).astype(f32)
    row = lambda n: params[n].reshape(1, -1).astype(f32)
    return {
        "ln1g": row("ln1_g"), "ln1b": row("ln1_b"),
        "wqkv": wqkv, "bqkv": bqkv,
        "wo": params["wo"].astype(bf16), "bo": row("bo"),
        "ln2g": row("ln2_g"), "ln2b": row("ln2_b"),
        "w1": params["w1"].astype(bf16), "b1": row("b1"),
        "w2": params["w2"].astype(bf16), "b2": row("b2"),
    }


# ----------------------------------------------------------------------------
# Thin, jit-friendly wrapper
# ----------------------------------------------------------------------------
_PREP_ORDER = ("ln1g", "ln1b", "wqkv", "bqkv", "wo", "bo",
               "ln2g", "ln2b", "w1", "b1", "w2", "b2")


def clip_layer(x, mask, prep, *, heads, activation="quick_gelu"):
    """x: (B, S, D) float32; mask: (S, S) additive mask or None;
    prep: output of prepare_clip_params()."""
    B, S, D = x.shape
    F = prep["w1"].shape[1]
    has_mask = mask is not None
    prefetch_w = (B == 1)   # hide MLP-weight DMA behind attention at batch 1
    call = _build_clip_call(B, S, D, F, heads, has_mask, activation,
                            jnp.dtype(x.dtype).name, prefetch_w)
    args = [x]
    if has_mask:
        args.append(mask.astype(jnp.float32))
    args += [prep[k] for k in _PREP_ORDER]
    return call(*args)


# ----------------------------------------------------------------------------
# Pure-JAX reference (mirrors the torch forward, all f32)
# ----------------------------------------------------------------------------
def _reference(x, mask, p, heads, activation):
    def ln(h, g, b):
        mu = jnp.mean(h, axis=-1, keepdims=True)
        var = jnp.mean((h - mu) ** 2, axis=-1, keepdims=True)
        return (h - mu) / jnp.sqrt(var + LN_EPS) * g + b

    B, S, D = x.shape
    dh = D // heads
    xn = ln(x, p["ln1_g"], p["ln1_b"])
    q = xn @ p["wq"] + p["bq"]
    k = xn @ p["wk"] + p["bk"]
    v = xn @ p["wv"] + p["bv"]
    q = q.reshape(B, S, heads, dh).transpose(0, 2, 1, 3)
    k = k.reshape(B, S, heads, dh).transpose(0, 2, 1, 3)
    v = v.reshape(B, S, heads, dh).transpose(0, 2, 1, 3)
    s = jnp.einsum("bhqd,bhkd->bhqk", q, k) / math.sqrt(dh)
    if mask is not None:
        s = s + mask
    a = jax.nn.softmax(s, axis=-1)
    o = jnp.einsum("bhqk,bhkd->bhqd", a, v).transpose(0, 2, 1, 3).reshape(B, S, D)
    o = o @ p["wo"] + p["bo"]
    x1 = x + o
    h = ln(x1, p["ln2_g"], p["ln2_b"]) @ p["w1"] + p["b1"]
    if activation == "quick_gelu":
        h = h * jax.nn.sigmoid(1.702 * h)
    else:
        h = jax.nn.gelu(h, approximate=False)
    return x1 + h @ p["w2"] + p["b2"]


def make_params(key, embed_dim, intermediate_size):
    ks = jax.random.split(key, 12)
    D, F = embed_dim, intermediate_size
    nrm = lambda k, s: (0.02 * jax.random.normal(k, s)).astype(jnp.float32)
    return {
        "ln1_g": jnp.ones((D,), jnp.float32),
        "ln1_b": jnp.zeros((D,), jnp.float32),
        # weights stored already-transposed: y = x @ W + b  (W: (in, out))
        "wq": nrm(ks[0], (D, D)), "bq": nrm(ks[1], (D,)),
        "wk": nrm(ks[2], (D, D)), "bk": nrm(ks[3], (D,)),
        "wv": nrm(ks[4], (D, D)), "bv": nrm(ks[5], (D,)),
        "wo": nrm(ks[6], (D, D)), "bo": nrm(ks[7], (D,)),
        "ln2_g": jnp.ones((D,), jnp.float32),
        "ln2_b": jnp.zeros((D,), jnp.float32),
        "w1": nrm(ks[8], (D, F)), "b1": nrm(ks[9], (F,)),
        "w2": nrm(ks[10], (F, D)), "b2": nrm(ks[11], (D,)),
    }


if __name__ == "__main__":
    B, S, D, H, F = 2, 8, 32, 4, 128
    key = jax.random.PRNGKey(0)
    kx, kx1, kp = jax.random.split(key, 3)
    x = jax.random.normal(kx, (B, S, D), dtype=jnp.float32)
    x1 = jax.random.normal(kx1, (1, S, D), dtype=jnp.float32)
    params = make_params(kp, D, F)
    prep = prepare_clip_params(params, H)     # once per layer, reused per call

    fwd = jax.jit(functools.partial(clip_layer, heads=H, activation="quick_gelu"))

    # bf16 matmul operands + approx reciprocal -> slightly loose tolerance (intentional).
    TOL = dict(rtol=2e-2, atol=2e-2)
    mask = jnp.triu(jnp.full((S, S), -1e9, dtype=jnp.float32), k=1)

    # 1) B=2, mask=None (vision-tower style): mask input / add skipped entirely.
    out = jax.block_until_ready(fwd(x, None, prep))
    ref = _reference(x, None, params, H, "quick_gelu")
    np.testing.assert_allclose(np.asarray(out), np.asarray(ref), **TOL)

    # 2) B=2, additive causal mask (text-tower style).
    out_m = jax.block_until_ready(fwd(x, mask, prep))
    ref_m = _reference(x, mask, params, H, "quick_gelu")
    np.testing.assert_allclose(np.asarray(out_m), np.asarray(ref_m), **TOL)

    # 3) B=1 with mask: exercises the manual w1/w2 DMA-overlap path.
    out_1 = jax.block_until_ready(fwd(x1, mask, prep))
    ref_1 = _reference(x1, mask, params, H, "quick_gelu")
    np.testing.assert_allclose(np.asarray(out_1), np.asarray(ref_1), **TOL)

    print("KERNEL_OK")
</pallas_src>

<mosaic_0001>
module attributes {stable_mosaic.version = 11 : i64} {
  func.func @kernel(%arg0: i32, %arg1: memref<1x8x32xf32, #tpu.memory_space<vmem>>, %arg2: memref<1x32xf32, #tpu.memory_space<vmem>>, %arg3: memref<1x32xf32, #tpu.memory_space<vmem>>, %arg4: memref<32x96xbf16, #tpu.memory_space<vmem>>, %arg5: memref<1x96xf32, #tpu.memory_space<vmem>>, %arg6: memref<32x32xbf16, #tpu.memory_space<vmem>>, %arg7: memref<1x32xf32, #tpu.memory_space<vmem>>, %arg8: memref<1x32xf32, #tpu.memory_space<vmem>>, %arg9: memref<1x32xf32, #tpu.memory_space<vmem>>, %arg10: memref<32x128xbf16, #tpu.memory_space<vmem>>, %arg11: memref<1x128xf32, #tpu.memory_space<vmem>>, %arg12: memref<128x32xbf16, #tpu.memory_space<vmem>>, %arg13: memref<1x32xf32, #tpu.memory_space<vmem>>, %arg14: memref<1x8x32xf32, #tpu.memory_space<vmem>>, %arg15: memref<8x96xbf16, #tpu.memory_space<vmem>>, %arg16: memref<8x32xbf16, #tpu.memory_space<vmem>>) attributes {dimension_semantics = [#tpu.dimension_semantics<parallel>], iteration_bounds = array<i64: 2>, scalar_prefetch = 0 : i64, scratch_operands = 2 : i64, tpu.core_type = #tpu.core_type<tc>, window_params = [{transform_indices = @transform_0, window_bounds = array<i64: 1, 8, 32>}, {pipeline_mode = #tpu.pipeline_mode<synchronous>, transform_indices = @transform_1, window_bounds = array<i64: 1, 32>}, {pipeline_mode = #tpu.pipeline_mode<synchronous>, transform_indices = @transform_2, window_bounds = array<i64: 1, 32>}, {pipeline_mode = #tpu.pipeline_mode<synchronous>, transform_indices = @transform_3, window_bounds = array<i64: 32, 96>}, {pipeline_mode = #tpu.pipeline_mode<synchronous>, transform_indices = @transform_4, window_bounds = array<i64: 1, 96>}, {pipeline_mode = #tpu.pipeline_mode<synchronous>, transform_indices = @transform_5, window_bounds = array<i64: 32, 32>}, {pipeline_mode = #tpu.pipeline_mode<synchronous>, transform_indices = @transform_6, window_bounds = array<i64: 1, 32>}, {pipeline_mode = #tpu.pipeline_mode<synchronous>, transform_indices = @transform_7, window_bounds = array<i64: 1, 32>}, {pipeline_mode = #tpu.pipeline_mode<synchronous>, transform_indices = @transform_8, window_bounds = array<i64: 1, 32>}, {pipeline_mode = #tpu.pipeline_mode<synchronous>, transform_indices = @transform_9, window_bounds = array<i64: 32, 128>}, {pipeline_mode = #tpu.pipeline_mode<synchronous>, transform_indices = @transform_10, window_bounds = array<i64: 1, 128>}, {pipeline_mode = #tpu.pipeline_mode<synchronous>, transform_indices = @transform_11, window_bounds = array<i64: 128, 32>}, {pipeline_mode = #tpu.pipeline_mode<synchronous>, transform_indices = @transform_12, window_bounds = array<i64: 1, 32>}, {transform_indices = @transform_13, window_bounds = array<i64: 1, 8, 32>}]} {
    %c0 = arith.constant 0 : index
    %c0_0 = arith.constant 0 : index
    %c0_1 = arith.constant 0 : index
    %0 = vector.load %arg1[%c0, %c0_0, %c0_1] : memref<1x8x32xf32, #tpu.memory_space<vmem>>, vector<1x8x32xf32>
    %1 = vector.shape_cast %0 : vector<1x8x32xf32> to vector<8x32xf32>
    %c0_2 = arith.constant 0 : index
    %c0_3 = arith.constant 0 : index
    %2 = vector.load %arg2[%c0_2, %c0_3] : memref<1x32xf32, #tpu.memory_space<vmem>>, vector<1x32xf32>
    %3 = vector.shape_cast %2 : vector<1x32xf32> to vector<32xf32>
    %c0_4 = arith.constant 0 : index
    %c0_5 = arith.constant 0 : index
    %4 = vector.load %arg3[%c0_4, %c0_5] : memref<1x32xf32, #tpu.memory_space<vmem>>, vector<1x32xf32>
    %5 = vector.shape_cast %4 : vector<1x32xf32> to vector<32xf32>
    %cst = arith.constant dense<0.000000e+00> : vector<8xf32>
    %6 = vector.multi_reduction <add>, %1, %cst [1] : vector<8x32xf32> to vector<8xf32>
    %7 = vector.shape_cast %6 : vector<8xf32> to vector<8x1xf32>
    %cst_6 = arith.constant 3.200000e+01 : f32
    %8 = vector.broadcast %cst_6 : f32 to vector<8x1xf32>
    %9 = arith.divf %7, %8 : vector<8x1xf32>
    %10 = arith.mulf %1, %1 : vector<8x32xf32>
    %cst_7 = arith.constant dense<0.000000e+00> : vector<8xf32>
    %11 = vector.multi_reduction <add>, %10, %cst_7 [1] : vector<8x32xf32> to vector<8xf32>
    %12 = vector.shape_cast %11 : vector<8xf32> to vector<8x1xf32>
    %cst_8 = arith.constant 3.200000e+01 : f32
    %13 = vector.broadcast %cst_8 : f32 to vector<8x1xf32>
    %14 = arith.divf %12, %13 : vector<8x1xf32>
    %15 = arith.mulf %9, %9 : vector<8x1xf32>
    %16 = arith.subf %14, %15 : vector<8x1xf32>
    %17 = vector.broadcast %9 : vector<8x1xf32> to vector<8x32xf32>
    %18 = arith.subf %1, %17 : vector<8x32xf32>
    %cst_9 = arith.constant 9.99999974E-6 : f32
    %19 = vector.broadcast %cst_9 : f32 to vector<8x1xf32>
    %20 = arith.addf %16, %19 : vector<8x1xf32>
    %21 = math.rsqrt %20 : vector<8x1xf32>
    %22 = vector.broadcast %21 : vector<8x1xf32> to vector<8x32xf32>
    %23 = arith.mulf %18, %22 : vector<8x32xf32>
    %24 = vector.shape_cast %3 : vector<32xf32> to vector<1x32xf32>
    %25 = vector.broadcast %24 : vector<1x32xf32> to vector<8x32xf32>
    %26 = arith.mulf %23, %25 : vector<8x32xf32>
    %27 = vector.shape_cast %5 : vector<32xf32> to vector<1x32xf32>
    %28 = vector.broadcast %27 : vector<1x32xf32> to vector<8x32xf32>
    %29 = arith.addf %26, %28 : vector<8x32xf32>
    %30 = arith.truncf %29 : vector<8x32xf32> to vector<8x32xbf16>
    %c0_10 = arith.constant 0 : index
    %c0_11 = arith.constant 0 : index
    %31 = vector.load %arg4[%c0_10, %c0_11] : memref<32x96xbf16, #tpu.memory_space<vmem>>, vector<32x96xbf16>
    %cst_12 = arith.constant dense<0.000000e+00> : vector<8x96xf32>
    %32 = tpu.matmul %30, %31, %cst_12 {dimension_numbers = #tpu.dot_dimension_numbers<[1], [0], [0], [1], [0, 0, 1, 1], [], []>} : vector<8x32xbf16>, vector<32x96xbf16>, vector<8x96xf32> -> vector<8x96xf32>
    %c0_13 = arith.constant 0 : index
    %c0_14 = arith.constant 0 : index
    %33 = vector.load %arg5[%c0_13, %c0_14] : memref<1x96xf32, #tpu.memory_space<vmem>>, vector<1x96xf32>
    %34 = vector.shape_cast %33 : vector<1x96xf32> to vector<96xf32>
    %35 = vector.shape_cast %34 : vector<96xf32> to vector<1x96xf32>
    %36 = vector.broadcast %35 : vector<1x96xf32> to vector<8x96xf32>
    %37 = arith.addf %32, %36 : vector<8x96xf32>
    %38 = arith.truncf %37 : vector<8x96xf32> to vector<8x96xbf16>
    %c0_15 = arith.constant 0 : index
    %c0_16 = arith.constant 0 : index
    %39 = vector.load %arg15[%c0_15, %c0_16] : memref<8x96xbf16, #tpu.memory_space<vmem>>, vector<8x96xbf16>
    tpu.vector_store %arg15[%c0_15, %c0_16], %38 {strides = array<i32>} : memref<8x96xbf16, #tpu.memory_space<vmem>>, vector<8x96xbf16>,
    %c0_17 = arith.constant 0 : index
    %c0_18 = arith.constant 0 : index
    %40 = vector.load %arg15[%c0_17, %c0_18] : memref<8x96xbf16, #tpu.memory_space<vmem>>, vector<8x8xbf16>
    %c0_19 = arith.constant 0 : index
    %c32 = arith.constant 32 : index
    %41 = vector.load %arg15[%c0_19, %c32] : memref<8x96xbf16, #tpu.memory_space<vmem>>, vector<8x8xbf16>
    %c0_20 = arith.constant 0 : index
    %c64 = arith.constant 64 : index
    %42 = vector.load %arg15[%c0_20, %c64] : memref<8x96xbf16, #tpu.memory_space<vmem>>, vector<8x8xbf16>
    %cst_21 = arith.constant dense<0.000000e+00> : vector<8x8xf32>
    %43 = tpu.matmul %40, %41, %cst_21 {dimension_numbers = #tpu.dot_dimension_numbers<[1], [1], [0], [0], [0, 0, 1, 0], [], []>} : vector<8x8xbf16>, vector<8x8xbf16>, vector<8x8xf32> -> vector<8x8xf32>
    %cst_22 = arith.constant dense<0xFF800000> : vector<8xf32>
    %44 = vector.multi_reduction <maximumf>, %43, %cst_22 [1] : vector<8x8xf32> to vector<8xf32>
    %45 = vector.shape_cast %44 : vector<8xf32> to vector<8x1xf32>
    %46 = vector.broadcast %45 : vector<8x1xf32> to vector<8x8xf32>
    %47 = arith.subf %43, %46 : vector<8x8xf32>
    %48 = math.exp %47 : vector<8x8xf32>
    %cst_23 = arith.constant dense<0.000000e+00> : vector<8xf32>
    %49 = vector.multi_reduction <add>, %48, %cst_23 [1] : vector<8x8xf32> to vector<8xf32>
    %50 = vector.shape_cast %49 : vector<8xf32> to vector<8x1xf32>
    %51 = arith.truncf %48 : vector<8x8xf32> to vector<8x8xbf16>
    %cst_24 = arith.constant dense<0.000000e+00> : vector<8x8xf32>
    %52 = tpu.matmul %51, %42, %cst_24 {dimension_numbers = #tpu.dot_dimension_numbers<[1], [0], [0], [1], [0, 0, 1, 1], [], []>} : vector<8x8xbf16>, vector<8x8xbf16>, vector<8x8xf32> -> vector<8x8xf32>
    %53 = tpu.reciprocal %50 {approx = true} : vector<8x1xf32> -> vector<8x1xf32>
    %54 = vector.broadcast %53 : vector<8x1xf32> to vector<8x8xf32>
    %55 = arith.mulf %52, %54 : vector<8x8xf32>
    %56 = arith.truncf %55 : vector<8x8xf32> to vector<8x8xbf16>
    %c0_25 = arith.constant 0 : index
    %c0_26 = arith.constant 0 : index
    %57 = vector.load %arg16[%c0_25, %c0_26] : memref<8x32xbf16, #tpu.memory_space<vmem>>, vector<8x8xbf16>
    tpu.vector_store %arg16[%c0_25, %c0_26], %56 {strides = array<i32>} : memref<8x32xbf16, #tpu.memory_space<vmem>>, vector<8x8xbf16>,
    %c0_27 = arith.constant 0 : index
    %c8 = arith.constant 8 : index
    %58 = vector.load %arg15[%c0_27, %c8] : memref<8x96xbf16, #tpu.memory_space<vmem>>, vector<8x8xbf16>
    %c0_28 = arith.constant 0 : index
    %c40 = arith.constant 40 : index
    %59 = vector.load %arg15[%c0_28, %c40] : memref<8x96xbf16, #tpu.memory_space<vmem>>, vector<8x8xbf16>
    %c0_29 = arith.constant 0 : index
    %c72 = arith.constant 72 : index
    %60 = vector.load %arg15[%c0_29, %c72] : memref<8x96xbf16, #tpu.memory_space<vmem>>, vector<8x8xbf16>
    %cst_30 = arith.constant dense<0.000000e+00> : vector<8x8xf32>
    %61 = tpu.matmul %58, %59, %cst_30 {dimension_numbers = #tpu.dot_dimension_numbers<[1], [1], [0], [0], [0, 0, 1, 0], [], []>} : vector<8x8xbf16>, vector<8x8xbf16>, vector<8x8xf32> -> vector<8x8xf32>
    %cst_31 = arith.constant dense<0xFF800000> : vector<8xf32>
    %62 = vector.multi_reduction <maximumf>, %61, %cst_31 [1] : vector<8x8xf32> to vector<8xf32>
    %63 = vector.shape_cast %62 : vector<8xf32> to vector<8x1xf32>
    %64 = vector.broadcast %63 : vector<8x1xf32> to vector<8x8xf32>
    %65 = arith.subf %61, %64 : vector<8x8xf32>
    %66 = math.exp %65 : vector<8x8xf32>
    %cst_32 = arith.constant dense<0.000000e+00> : vector<8xf32>
    %67 = vector.multi_reduction <add>, %66, %cst_32 [1] : vector<8x8xf32> to vector<8xf32>
    %68 = vector.shape_cast %67 : vector<8xf32> to vector<8x1xf32>
    %69 = arith.truncf %66 : vector<8x8xf32> to vector<8x8xbf16>
    %cst_33 = arith.constant dense<0.000000e+00> : vector<8x8xf32>
    %70 = tpu.matmul %69, %60, %cst_33 {dimension_numbers = #tpu.dot_dimension_numbers<[1], [0], [0], [1], [0, 0, 1, 1], [], []>} : vector<8x8xbf16>, vector<8x8xbf16>, vector<8x8xf32> -> vector<8x8xf32>
    %71 = tpu.reciprocal %68 {approx = true} : vector<8x1xf32> -> vector<8x1xf32>
    %72 = vector.broadcast %71 : vector<8x1xf32> to vector<8x8xf32>
    %73 = arith.mulf %70, %72 : vector<8x8xf32>
    %74 = arith.truncf %73 : vector<8x8xf32> to vector<8x8xbf16>
    %c0_34 = arith.constant 0 : index
    %c8_35 = arith.constant 8 : index
    %75 = vector.load %arg16[%c0_34, %c8_35] : memref<8x32xbf16, #tpu.memory_space<vmem>>, vector<8x8xbf16>
    tpu.vector_store %arg16[%c0_34, %c8_35], %74 {strides = array<i32>} : memref<8x32xbf16, #tpu.memory_space<vmem>>, vector<8x8xbf16>,
    %c0_36 = arith.constant 0 : index
    %c16 = arith.constant 16 : index
    %76 = vector.load %arg15[%c0_36, %c16] : memref<8x96xbf16, #tpu.memory_space<vmem>>, vector<8x8xbf16>
    %c0_37 = arith.constant 0 : index
    %c48 = arith.constant 48 : index
    %77 = vector.load %arg15[%c0_37, %c48] : memref<8x96xbf16, #tpu.memory_space<vmem>>, vector<8x8xbf16>
    %c0_38 = arith.constant 0 : index
    %c80 = arith.constant 80 : index
    %78 = vector.load %arg15[%c0_38, %c80] : memref<8x96xbf16, #tpu.memory_space<vmem>>, vector<8x8xbf16>
    %cst_39 = arith.constant dense<0.000000e+00> : vector<8x8xf32>
    %79 = tpu.matmul %76, %77, %cst_39 {dimension_numbers = #tpu.dot_dimension_numbers<[1], [1], [0], [0], [0, 0, 1, 0], [], []>} : vector<8x8xbf16>, vector<8x8xbf16>, vector<8x8xf32> -> vector<8x8xf32>
    %cst_40 = arith.constant dense<0xFF800000> : vector<8xf32>
    %80 = vector.multi_reduction <maximumf>, %79, %cst_40 [1] : vector<8x8xf32> to vector<8xf32>
    %81 = vector.shape_cast %80 : vector<8xf32> to vector<8x1xf32>
    %82 = vector.broadcast %81 : vector<8x1xf32> to vector<8x8xf32>
    %83 = arith.subf %79, %82 : vector<8x8xf32>
    %84 = math.exp %83 : vector<8x8xf32>
    %cst_41 = arith.constant dense<0.000000e+00> : vector<8xf32>
    %85 = vector.multi_reduction <add>, %84, %cst_41 [1] : vector<8x8xf32> to vector<8xf32>
    %86 = vector.shape_cast %85 : vector<8xf32> to vector<8x1xf32>
    %87 = arith.truncf %84 : vector<8x8xf32> to vector<8x8xbf16>
    %cst_42 = arith.constant dense<0.000000e+00> : vector<8x8xf32>
    %88 = tpu.matmul %87, %78, %cst_42 {dimension_numbers = #tpu.dot_dimension_numbers<[1], [0], [0], [1], [0, 0, 1, 1], [], []>} : vector<8x8xbf16>, vector<8x8xbf16>, vector<8x8xf32> -> vector<8x8xf32>
    %89 = tpu.reciprocal %86 {approx = true} : vector<8x1xf32> -> vector<8x1xf32>
    %90 = vector.broadcast %89 : vector<8x1xf32> to vector<8x8xf32>
    %91 = arith.mulf %88, %90 : vector<8x8xf32>
    %92 = arith.truncf %91 : vector<8x8xf32> to vector<8x8xbf16>
    %c0_43 = arith.constant 0 : index
    %c16_44 = arith.constant 16 : index
    %93 = vector.load %arg16[%c0_43, %c16_44] : memref<8x32xbf16, #tpu.memory_space<vmem>>, vector<8x8xbf16>
    tpu.vector_store %arg16[%c0_43, %c16_44], %92 {strides = array<i32>} : memref<8x32xbf16, #tpu.memory_space<vmem>>, vector<8x8xbf16>,
    %c0_45 = arith.constant 0 : index
    %c24 = arith.constant 24 : index
    %94 = vector.load %arg15[%c0_45, %c24] : memref<8x96xbf16, #tpu.memory_space<vmem>>, vector<8x8xbf16>
    %c0_46 = arith.constant 0 : index
    %c56 = arith.constant 56 : index
    %95 = vector.load %arg15[%c0_46, %c56] : memref<8x96xbf16, #tpu.memory_space<vmem>>, vector<8x8xbf16>
    %c0_47 = arith.constant 0 : index
    %c88 = arith.constant 88 : index
    %96 = vector.load %arg15[%c0_47, %c88] : memref<8x96xbf16, #tpu.memory_space<vmem>>, vector<8x8xbf16>
    %cst_48 = arith.constant dense<0.000000e+00> : vector<8x8xf32>
    %97 = tpu.matmul %94, %95, %cst_48 {dimension_numbers = #tpu.dot_dimension_numbers<[1], [1], [0], [0], [0, 0, 1, 0], [], []>} : vector<8x8xbf16>, vector<8x8xbf16>, vector<8x8xf32> -> vector<8x8xf32>
    %cst_49 = arith.constant dense<0xFF800000> : vector<8xf32>
    %98 = vector.multi_reduction <maximumf>, %97, %cst_49 [1] : vector<8x8xf32> to vector<8xf32>
    %99 = vector.shape_cast %98 : vector<8xf32> to vector<8x1xf32>
    %100 = vector.broadcast %99 : vector<8x1xf32> to vector<8x8xf32>
    %101 = arith.subf %97, %100 : vector<8x8xf32>
    %102 = math.exp %101 : vector<8x8xf32>
    %cst_50 = arith.constant dense<0.000000e+00> : vector<8xf32>
    %103 = vector.multi_reduction <add>, %102, %cst_50 [1] : vector<8x8xf32> to vector<8xf32>
    %104 = vector.shape_cast %103 : vector<8xf32> to vector<8x1xf32>
    %105 = arith.truncf %102 : vector<8x8xf32> to vector<8x8xbf16>
    %cst_51 = arith.constant dense<0.000000e+00> : vector<8x8xf32>
    %106 = tpu.matmul %105, %96, %cst_51 {dimension_numbers = #tpu.dot_dimension_numbers<[1], [0], [0], [1], [0, 0, 1, 1], [], []>} : vector<8x8xbf16>, vector<8x8xbf16>, vector<8x8xf32> -> vector<8x8xf32>
    %107 = tpu.reciprocal %104 {approx = true} : vector<8x1xf32> -> vector<8x1xf32>
    %108 = vector.broadcast %107 : vector<8x1xf32> to vector<8x8xf32>
    %109 = arith.mulf %106, %108 : vector<8x8xf32>
    %110 = arith.truncf %109 : vector<8x8xf32> to vector<8x8xbf16>
    %c0_52 = arith.constant 0 : index
    %c24_53 = arith.constant 24 : index
    %111 = vector.load %arg16[%c0_52, %c24_53] : memref<8x32xbf16, #tpu.memory_space<vmem>>, vector<8x8xbf16>
    tpu.vector_store %arg16[%c0_52, %c24_53], %110 {strides = array<i32>} : memref<8x32xbf16, #tpu.memory_space<vmem>>, vector<8x8xbf16>,
    %c0_54 = arith.constant 0 : index
    %c0_55 = arith.constant 0 : index
    %112 = vector.load %arg16[%c0_54, %c0_55] : memref<8x32xbf16, #tpu.memory_space<vmem>>, vector<8x32xbf16>
    %c0_56 = arith.constant 0 : index
    %c0_57 = arith.constant 0 : index
    %113 = vector.load %arg6[%c0_56, %c0_57] : memref<32x32xbf16, #tpu.memory_space<vmem>>, vector<32x32xbf16>
    %cst_58 = arith.constant dense<0.000000e+00> : vector<8x32xf32>
    %114 = tpu.matmul %112, %113, %cst_58 {dimension_numbers = #tpu.dot_dimension_numbers<[1], [0], [0], [1], [0, 0, 1, 1], [], []>} : vector<8x32xbf16>, vector<32x32xbf16>, vector<8x32xf32> -> vector<8x32xf32>
    %c0_59 = arith.constant 0 : index
    %c0_60 = arith.constant 0 : index
    %115 = vector.load %arg7[%c0_59, %c0_60] : memref<1x32xf32, #tpu.memory_space<vmem>>, vector<1x32xf32>
    %116 = vector.shape_cast %115 : vector<1x32xf32> to vector<32xf32>
    %117 = vector.shape_cast %116 : vector<32xf32> to vector<1x32xf32>
    %118 = vector.broadcast %117 : vector<1x32xf32> to vector<8x32xf32>
    %119 = arith.addf %114, %118 : vector<8x32xf32>
    %120 = arith.addf %1, %119 : vector<8x32xf32>
    %c0_61 = arith.constant 0 : index
    %c0_62 = arith.constant 0 : index
    %121 = vector.load %arg8[%c0_61, %c0_62] : memref<1x32xf32, #tpu.memory_space<vmem>>, vector<1x32xf32>
    %122 = vector.shape_cast %121 : vector<1x32xf32> to vector<32xf32>
    %c0_63 = arith.constant 0 : index
    %c0_64 = arith.constant 0 : index
    %123 = vector.load %arg9[%c0_63, %c0_64] : memref<1x32xf32, #tpu.memory_space<vmem>>, vector<1x32xf32>
    %124 = vector.shape_cast %123 : vector<1x32xf32> to vector<32xf32>
    %cst_65 = arith.constant dense<0.000000e+00> : vector<8xf32>
    %125 = vector.multi_reduction <add>, %120, %cst_65 [1] : vector<8x32xf32> to vector<8xf32>
    %126 = vector.shape_cast %125 : vector<8xf32> to vector<8x1xf32>
    %cst_66 = arith.constant 3.200000e+01 : f32
    %127 = vector.broadcast %cst_66 : f32 to vector<8x1xf32>
    %128 = arith.divf %126, %127 : vector<8x1xf32>
    %129 = arith.mulf %120, %120 : vector<8x32xf32>
    %cst_67 = arith.constant dense<0.000000e+00> : vector<8xf32>
    %130 = vector.multi_reduction <add>, %129, %cst_67 [1] : vector<8x32xf32> to vector<8xf32>
    %131 = vector.shape_cast %130 : vector<8xf32> to vector<8x1xf32>
    %cst_68 = arith.constant 3.200000e+01 : f32
    %132 = vector.broadcast %cst_68 : f32 to vector<8x1xf32>
    %133 = arith.divf %131, %132 : vector<8x1xf32>
    %134 = arith.mulf %128, %128 : vector<8x1xf32>
    %135 = arith.subf %133, %134 : vector<8x1xf32>
    %136 = vector.broadcast %128 : vector<8x1xf32> to vector<8x32xf32>
    %137 = arith.subf %120, %136 : vector<8x32xf32>
    %cst_69 = arith.constant 9.99999974E-6 : f32
    %138 = vector.broadcast %cst_69 : f32 to vector<8x1xf32>
    %139 = arith.addf %135, %138 : vector<8x1xf32>
    %140 = math.rsqrt %139 : vector<8x1xf32>
    %141 = vector.broadcast %140 : vector<8x1xf32> to vector<8x32xf32>
    %142 = arith.mulf %137, %141 : vector<8x32xf32>
    %143 = vector.shape_cast %122 : vector<32xf32> to vector<1x32xf32>
    %144 = vector.broadcast %143 : vector<1x32xf32> to vector<8x32xf32>
    %145 = arith.mulf %142, %144 : vector<8x32xf32>
    %146 = vector.shape_cast %124 : vector<32xf32> to vector<1x32xf32>
    %147 = vector.broadcast %146 : vector<1x32xf32> to vector<8x32xf32>
    %148 = arith.addf %145, %147 : vector<8x32xf32>
    %149 = arith.truncf %148 : vector<8x32xf32> to vector<8x32xbf16>
    %c0_70 = arith.constant 0 : index
    %c0_71 = arith.constant 0 : index
    %150 = vector.load %arg10[%c0_70, %c0_71] : memref<32x128xbf16, #tpu.memory_space<vmem>>, vector<32x128xbf16>
    %cst_72 = arith.constant dense<0.000000e+00> : vector<8x128xf32>
    %151 = tpu.matmul %149, %150, %cst_72 {dimension_numbers = #tpu.dot_dimension_numbers<[1], [0], [0], [1], [0, 0, 1, 1], [], []>} : vector<8x32xbf16>, vector<32x128xbf16>, vector<8x128xf32> -> vector<8x128xf32>
    %c0_73 = arith.constant 0 : index
    %c0_74 = arith.constant 0 : index
    %152 = vector.load %arg11[%c0_73, %c0_74] : memref<1x128xf32, #tpu.memory_space<vmem>>, vector<1x128xf32>
    %153 = vector.shape_cast %152 : vector<1x128xf32> to vector<128xf32>
    %154 = vector.shape_cast %153 : vector<128xf32> to vector<1x128xf32>
    %155 = vector.broadcast %154 : vector<1x128xf32> to vector<8x128xf32>
    %156 = arith.addf %151, %155 : vector<8x128xf32>
    %cst_75 = arith.constant 1.702000e+00 : f32
    %157 = vector.broadcast %cst_75 : f32 to vector<8x128xf32>
    %158 = arith.mulf %157, %156 : vector<8x128xf32>
    %159 = arith.negf %158 : vector<8x128xf32>
    %160 = math.exp %159 : vector<8x128xf32>
    %cst_76 = arith.constant 1.000000e+00 : f32
    %161 = vector.broadcast %cst_76 : f32 to vector<8x128xf32>
    %162 = arith.addf %161, %160 : vector<8x128xf32>
    %163 = arith.divf %161, %162 : vector<8x128xf32>
    %164 = arith.mulf %156, %163 : vector<8x128xf32>
    %c0_77 = arith.constant 0 : index
    %c0_78 = arith.constant 0 : index
    %165 = vector.load %arg12[%c0_77, %c0_78] : memref<128x32xbf16, #tpu.memory_space<vmem>>, vector<128x32xbf16>
    %166 = arith.truncf %164 : vector<8x128xf32> to vector<8x128xbf16>
    %cst_79 = arith.constant dense<0.000000e+00> : vector<8x32xf32>
    %167 = tpu.matmul %166, %165, %cst_79 {dimension_numbers = #tpu.dot_dimension_numbers<[1], [0], [0], [1], [0, 0, 1, 1], [], []>} : vector<8x128xbf16>, vector<128x32xbf16>, vector<8x32xf32> -> vector<8x32xf32>
    %c0_80 = arith.constant 0 : index
    %c0_81 = arith.constant 0 : index
    %168 = vector.load %arg13[%c0_80, %c0_81] : memref<1x32xf32, #tpu.memory_space<vmem>>, vector<1x32xf32>
    %169 = vector.shape_cast %168 : vector<1x32xf32> to vector<32xf32>
    %170 = vector.shape_cast %169 : vector<32xf32> to vector<1x32xf32>
    %171 = vector.broadcast %170 : vector<1x32xf32> to vector<8x32xf32>
    %172 = arith.addf %167, %171 : vector<8x32xf32>
    %173 = arith.addf %120, %172 : vector<8x32xf32>
    %c0_82 = arith.constant 0 : index
    %c0_83 = arith.constant 0 : index
    %c0_84 = arith.constant 0 : index
    %174 = vector.load %arg14[%c0_82, %c0_83, %c0_84] : memref<1x8x32xf32, #tpu.memory_space<vmem>>, vector<1x8x32xf32>
    %175 = vector.shape_cast %174 : vector<1x8x32xf32> to vector<8x32xf32>
    %176 = vector.shape_cast %173 : vector<8x32xf32> to vector<1x8x32xf32>
    tpu.vector_store %arg14[%c0_82, %c0_83, %c0_84], %176 {strides = array<i32>} : memref<1x8x32xf32, #tpu.memory_space<vmem>>, vector<1x8x32xf32>,
    return
  }
  func.func @transform_0(%arg0: i32) -> (i32, i32, i32) {
    %c0_i32 = arith.constant 0 : i32
    %c0_i32_0 = arith.constant 0 : i32
    %c0_i32_1 = arith.constant 0 : i32
    return %arg0, %c0_i32, %c0_i32_0 : i32, i32, i32
  }
  func.func @transform_1(%arg0: i32) -> (i32, i32) {
    %c0_i32 = arith.constant 0 : i32
    %c0_i32_0 = arith.constant 0 : i32
    %c0_i32_1 = arith.constant 0 : i32
    return %c0_i32, %c0_i32_0 : i32, i32
  }
  func.func @transform_2(%arg0: i32) -> (i32, i32) {
    %c0_i32 = arith.constant 0 : i32
    %c0_i32_0 = arith.constant 0 : i32
    %c0_i32_1 = arith.constant 0 : i32
    return %c0_i32, %c0_i32_0 : i32, i32
  }
  func.func @transform_3(%arg0: i32) -> (i32, i32) {
    %c0_i32 = arith.constant 0 : i32
    %c0_i32_0 = arith.constant 0 : i32
    %c0_i32_1 = arith.constant 0 : i32
    return %c0_i32, %c0_i32_0 : i32, i32
  }
  func.func @transform_4(%arg0: i32) -> (i32, i32) {
    %c0_i32 = arith.constant 0 : i32
    %c0_i32_0 = arith.constant 0 : i32
    %c0_i32_1 = arith.constant 0 : i32
    return %c0_i32, %c0_i32_0 : i32, i32
  }
  func.func @transform_5(%arg0: i32) -> (i32, i32) {
    %c0_i32 = arith.constant 0 : i32
    %c0_i32_0 = arith.constant 0 : i32
    %c0_i32_1 = arith.constant 0 : i32
    return %c0_i32, %c0_i32_0 : i32, i32
  }
  func.func @transform_6(%arg0: i32) -> (i32, i32) {
    %c0_i32 = arith.constant 0 : i32
    %c0_i32_0 = arith.constant 0 : i32
    %c0_i32_1 = arith.constant 0 : i32
    return %c0_i32, %c0_i32_0 : i32, i32
  }
  func.func @transform_7(%arg0: i32) -> (i32, i32) {
    %c0_i32 = arith.constant 0 : i32
    %c0_i32_0 = arith.constant 0 : i32
    %c0_i32_1 = arith.constant 0 : i32
    return %c0_i32, %c0_i32_0 : i32, i32
  }
  func.func @transform_8(%arg0: i32) -> (i32, i32) {
    %c0_i32 = arith.constant 0 : i32
    %c0_i32_0 = arith.constant 0 : i32
    %c0_i32_1 = arith.constant 0 : i32
    return %c0_i32, %c0_i32_0 : i32, i32
  }
  func.func @transform_9(%arg0: i32) -> (i32, i32) {
    %c0_i32 = arith.constant 0 : i32
    %c0_i32_0 = arith.constant 0 : i32
    %c0_i32_1 = arith.constant 0 : i32
    return %c0_i32, %c0_i32_0 : i32, i32
  }
  func.func @transform_10(%arg0: i32) -> (i32, i32) {
    %c0_i32 = arith.constant 0 : i32
    %c0_i32_0 = arith.constant 0 : i32
    %c0_i32_1 = arith.constant 0 : i32
    return %c0_i32, %c0_i32_0 : i32, i32
  }
  func.func @transform_11(%arg0: i32) -> (i32, i32) {
    %c0_i32 = arith.constant 0 : i32
    %c0_i32_0 = arith.constant 0 : i32
    %c0_i32_1 = arith.constant 0 : i32
    return %c0_i32, %c0_i32_0 : i32, i32
  }
  func.func @transform_12(%arg0: i32) -> (i32, i32) {
    %c0_i32 = arith.constant 0 : i32
    %c0_i32_0 = arith.constant 0 : i32
    %c0_i32_1 = arith.constant 0 : i32
    return %c0_i32, %c0_i32_0 : i32, i32
  }
  func.func @transform_13(%arg0: i32) -> (i32, i32, i32) {
    %c0_i32 = arith.constant 0 : i32
    %c0_i32_0 = arith.constant 0 : i32
    %c0_i32_1 = arith.constant 0 : i32
    return %arg0, %c0_i32, %c0_i32_0 : i32, i32, i32
  }
}

</mosaic_0001>

<llo_original>
// kernel: clip_layer.1
$region0: #{clip_layer.1}
  #allocation0 [shape = 'u32[]', space=smem, size = 0x4, offset = 0x4, fixed_abs, tag = 'smem constant byte address 0x4 - core index']
  #allocation1 [shape = 'u32[144,128]{1,0:T(1,128)}', space=vmem, size = 0x12000, scoped, tag = 'internal scratch']
  #allocation2 [shape = 'bf16[8,96]{1,0:T(8,128)(2,1)}', space=vmem, size = 0x800, scoped, tag = 'scratch operand']
  #allocation3 [shape = 'bf16[8,32]{1,0:T(8,128)(2,1)}', space=vmem, size = 0x800, scoped, tag = 'scratch operand']
  %s0 = inlined_call_operand.vmem [shape: f32[2,8,32], index: 0, kind: input, shape index: {}]
  %s1 = inlined_call_operand.vmem [shape: f32[1,32], index: 1, kind: input, shape index: {}]
  %s2 = inlined_call_operand.vmem [shape: f32[1,32], index: 2, kind: input, shape index: {}]
  %s3 = inlined_call_operand.vmem [shape: bf16[32,96], index: 3, kind: input, shape index: {}]
  %s4 = inlined_call_operand.vmem [shape: f32[1,96], index: 4, kind: input, shape index: {}]
  %s5 = inlined_call_operand.vmem [shape: bf16[32,32], index: 5, kind: input, shape index: {}]
  %s6 = inlined_call_operand.vmem [shape: f32[1,32], index: 6, kind: input, shape index: {}]
  %s7 = inlined_call_operand.vmem [shape: f32[1,32], index: 7, kind: input, shape index: {}]
  %s8 = inlined_call_operand.vmem [shape: f32[1,32], index: 8, kind: input, shape index: {}]
  %s9 = inlined_call_operand.vmem [shape: bf16[32,128], index: 9, kind: input, shape index: {}]
  %s10 = inlined_call_operand.vmem [shape: f32[1,128], index: 10, kind: input, shape index: {}]
  %s11 = inlined_call_operand.vmem [shape: bf16[128,32], index: 11, kind: input, shape index: {}]
  %s12 = inlined_call_operand.vmem [shape: f32[1,32], index: 12, kind: input, shape index: {}]
  %s13 = inlined_call_operand.hbm [shape: f32[2,8,32], index: 13, kind: output, shape index: {}]
  %s14 = sld [smem:[#allocation0]]
  $region85: #{clip_layer.1} parent=0
    _
  %s16 = ssub.s32 1, %s14
  %s17 = scalar_select 0, %s16, %s14
  $region1: #{clip_layer.1} parent=0
    #allocation4 [shape = 'u8[8192]{0}', space=vmem, size = 0x2000, scoped, tag = 'output window, operand 0']
    #allocation5 [shape = 's32[2]{0}', space=sflag, size = 0x8, scoped, tag = 'scoped memory for clip_layer.1']
    %18 = vsyncpa [#allocation5], 0
    %s19 = scalar_lea.sflag [#allocation5], 1
    %20 = vsyncpa %s19, 0
    loop: start=0, step=1, limit=4
    $region2: #{clip_layer.1} parent=1 // loop_pre_header
      _
    $region3: #{clip_layer.1} parent=1 // loop_header
      %s22 = sphi 0, %s26
      %p23 = scmp.ge.s32.totalorder %s22, 4
      %s32 = sphi 0, %s34
      %s35 = sphi 0, %s32
      %s36 = sphi 0, %s35
      %s52 = sphi 0, %s36
      %s56 = sphi 0, %s56
      %s58 = sphi 0, %s56
      %s59 = sphi 0, %s58
      %s73 = sphi 0, %s59
      %s77 = sphi 0, %s77
      %s79 = sphi 0, %s77
      %s80 = sphi 0, %s79
      %s94 = sphi 0, %s80
      %s98 = sphi 0, %s98
      %s100 = sphi 0, %s98
      %s101 = sphi 0, %s100
      %s115 = sphi 0, %s101
      %s119 = sphi 0, %s119
      %s121 = sphi 0, %s119
      %s122 = sphi 0, %s121
      %s136 = sphi 0, %s122
      %s140 = sphi 0, %s140
      %s142 = sphi 0, %s140
      %s143 = sphi 0, %s142
      %s157 = sphi 0, %s143
      %s161 = sphi 0, %s161
      %s163 = sphi 0, %s161
      %s164 = sphi 0, %s163
      %s178 = sphi 0, %s164
      %s182 = sphi 0, %s182
      %s184 = sphi 0, %s182
      %s185 = sphi 0, %s184
      %s199 = sphi 0, %s185
      %s203 = sphi 0, %s203
      %s205 = sphi 0, %s203
      %s206 = sphi 0, %s205
      %s220 = sphi 0, %s206
      %s224 = sphi 0, %s224
      %s226 = sphi 0, %s224
      %s227 = sphi 0, %s226
      %s241 = sphi 0, %s227
      %s245 = sphi 0, %s245
      %s247 = sphi 0, %s245
      %s248 = sphi 0, %s247
      %s262 = sphi 0, %s248
      %s266 = sphi 0, %s266
      %s268 = sphi 0, %s266
      %s269 = sphi 0, %s268
      %s283 = sphi 0, %s269
      %s287 = sphi 0, %s287
      %s289 = sphi 0, %s287
      %s290 = sphi 0, %s289
      %s304 = sphi 0, %s290
      %s310 = sphi 0, %s312
      %s313 = sphi 0, %s310
      %s314 = sphi 0, %s313
      %s330 = sphi 0, %s314
    $region4: #{clip_layer.1} parent=1 // loop_header_branch
      %25 = sbr.rel (%p23) target = $region8
    $region5: #{clip_layer.1} parent=1 // loop_body
      %s27 = ssub.s32 %s22, 1
      %s28 = ssub.s32 %s22, 2
      %s29 = sadd.s32 %s22, 1
      %s30 = ssub.s32 %s22, %s29
      %p31 = scmp.eq.s32.totalorder %s30, 0
      %s33 = sadd.s32 %s32, 1
      %s34 = scalar_select %p31, %s32, %s33
      %p37 = pneg %p31
      %p38 = scmp.eq.s32.totalorder %s22, 1
      %p39 = por %p37, %p38
      %p40 = scmp.ne.s32.totalorder %s32, %s35
      %p41 = scmp.eq.s32.totalorder %s22, 0
      %p42 = por %p40, %p41
      %p43 = scmp.ne.s32.totalorder %s32, %s35
      %p44 = scmp.eq.s32.totalorder %s27, 1
      %p45 = por %p43, %p44
      %p46 = scmp.ne.s32.totalorder %s35, %s36
      %p47 = scmp.eq.s32.totalorder %s27, 0
      %p48 = por %p46, %p47
      %p49 = scmp.ne.s32.totalorder %s35, %s36
      %p50 = scmp.eq.s32.totalorder %s28, 1
      %p51 = por %p49, %p50
      %p53 = scmp.ne.s32.totalorder %s36, %s52
      %p54 = scmp.eq.s32.totalorder %s28, 0
      %p55 = por %p53, %p54
      %s57 = sadd.s32 %s56, 1
      %p60 = scmp.eq.s32.totalorder %s22, 1
      %p61 = scmp.ne.s32.totalorder %s56, %s58
      %p62 = scmp.eq.s32.totalorder %s22, 0
      %p63 = por %p61, %p62
      %p64 = scmp.ne.s32.totalorder %s56, %s58
      %p65 = scmp.eq.s32.totalorder %s27, 1
      %p66 = por %p64, %p65
      %p67 = scmp.ne.s32.totalorder %s58, %s59
      %p68 = scmp.eq.s32.totalorder %s27, 0
      %p69 = por %p67, %p68
      %p70 = scmp.ne.s32.totalorder %s58, %s59
      %p71 = scmp.eq.s32.totalorder %s28, 1
      %p72 = por %p70, %p71
      %p74 = scmp.ne.s32.totalorder %s59, %s73
      %p75 = scmp.eq.s32.totalorder %s28, 0
      %p76 = por %p74, %p75
      %s78 = sadd.s32 %s77, 1
      %p81 = scmp.eq.s32.totalorder %s22, 1
      %p82 = scmp.ne.s32.totalorder %s77, %s79
      %p83 = scmp.eq.s32.totalorder %s22, 0
      %p84 = por %p82, %p83
      %p85 = scmp.ne.s32.totalorder %s77, %s79
      %p86 = scmp.eq.s32.totalorder %s27, 1
      %p87 = por %p85, %p86
      %p88 = scmp.ne.s32.totalorder %s79, %s80
      %p89 = scmp.eq.s32.totalorder %s27, 0
      %p90 = por %p88, %p89
      %p91 = scmp.ne.s32.totalorder %s79, %s80
      %p92 = scmp.eq.s32.totalorder %s28, 1
      %p93 = por %p91, %p92
      %p95 = scmp.ne.s32.totalorder %s80, %s94
      %p96 = scmp.eq.s32.totalorder %s28, 0
      %p97 = por %p95, %p96
      %s99 = sadd.s32 %s98, 1
      %p102 = scmp.eq.s32.totalorder %s22, 1
      %p103 = scmp.ne.s32.totalorder %s98, %s100
      %p104 = scmp.eq.s32.totalorder %s22, 0
      %p105 = por %p103, %p104
      %p106 = scmp.ne.s32.totalorder %s98, %s100
      %p107 = scmp.eq.s32.totalorder %s27, 1
      %p108 = por %p106, %p107
      %p109 = scmp.ne.s32.totalorder %s100, %s101
      %p110 = scmp.eq.s32.totalorder %s27, 0
      %p111 = por %p109, %p110
      %p112 = scmp.ne.s32.totalorder %s100, %s101
      %p113 = scmp.eq.s32.totalorder %s28, 1
      %p114 = por %p112, %p113
      %p116 = scmp.ne.s32.totalorder %s101, %s115
      %p117 = scmp.eq.s32.totalorder %s28, 0
      %p118 = por %p116, %p117
      %s120 = sadd.s32 %s119, 1
      %p123 = scmp.eq.s32.totalorder %s22, 1
      %p124 = scmp.ne.s32.totalorder %s119, %s121
      %p125 = scmp.eq.s32.totalorder %s22, 0
      %p126 = por %p124, %p125
      %p127 = scmp.ne.s32.totalorder %s119, %s121
      %p128 = scmp.eq.s32.totalorder %s27, 1
      %p129 = por %p127, %p128
      %p130 = scmp.ne.s32.totalorder %s121, %s122
      %p131 = scmp.eq.s32.totalorder %s27, 0
      %p132 = por %p130, %p131
      %p133 = scmp.ne.s32.totalorder %s121, %s122
      %p134 = scmp.eq.s32.totalorder %s28, 1
      %p135 = por %p133, %p134
      %p137 = scmp.ne.s32.totalorder %s122, %s136
      %p138 = scmp.eq.s32.totalorder %s28, 0
      %p139 = por %p137, %p138
      %s141 = sadd.s32 %s140, 1
      %p144 = scmp.eq.s32.totalorder %s22, 1
      %p145 = scmp.ne.s32.totalorder %s140, %s142
      %p146 = scmp.eq.s32.totalorder %s22, 0
      %p147 = por %p145, %p146
      %p148 = scmp.ne.s32.totalorder %s140, %s142
      %p149 = scmp.eq.s32.totalorder %s27, 1
      %p150 = por %p148, %p149
      %p151 = scmp.ne.s32.totalorder %s142, %s143
      %p152 = scmp.eq.s32.totalorder %s27, 0
      %p153 = por %p151, %p152
      %p154 = scmp.ne.s32.totalorder %s142, %s143
      %p155 = scmp.eq.s32.totalorder %s28, 1
      %p156 = por %p154, %p155
      %p158 = scmp.ne.s32.totalorder %s143, %s157
      %p159 = scmp.eq.s32.totalorder %s28, 0
      %p160 = por %p158, %p159
      %s162 = sadd.s32 %s161, 1
      %p165 = scmp.eq.s32.totalorder %s22, 1
      %p166 = scmp.ne.s32.totalorder %s161, %s163
      %p167 = scmp.eq.s32.totalorder %s22, 0
      %p168 = por %p166, %p167
      %p169 = scmp.ne.s32.totalorder %s161, %s163
      %p170 = scmp.eq.s32.totalorder %s27, 1
      %p171 = por %p169, %p170
      %p172 = scmp.ne.s32.totalorder %s163, %s164
      %p173 = scmp.eq.s32.totalorder %s27, 0
      %p174 = por %p172, %p173
      %p175 = scmp.ne.s32.totalorder %s163, %s164
      %p176 = scmp.eq.s32.totalorder %s28, 1
      %p177 = por %p175, %p176
      %p179 = scmp.ne.s32.totalorder %s164, %s178
      %p180 = scmp.eq.s32.totalorder %s28, 0
      %p181 = por %p179, %p180
      %s183 = sadd.s32 %s182, 1
      %p186 = scmp.eq.s32.totalorder %s22, 1
      %p187 = scmp.ne.s32.totalorder %s182, %s184
      %p188 = scmp.eq.s32.totalorder %s22, 0
      %p189 = por %p187, %p188
      %p190 = scmp.ne.s32.totalorder %s182, %s184
      %p191 = scmp.eq.s32.totalorder %s27, 1
      %p192 = por %p190, %p191
      %p193 = scmp.ne.s32.totalorder %s184, %s185
      %p194 = scmp.eq.s32.totalorder %s27, 0
      %p195 = por %p193, %p194
      %p196 = scmp.ne.s32.totalorder %s184, %s185
      %p197 = scmp.eq.s32.totalorder %s28, 1
      %p198 = por %p196, %p197
      %p200 = scmp.ne.s32.totalorder %s185, %s199
      %p201 = scmp.eq.s32.totalorder %s28, 0
      %p202 = por %p200, %p201
      %s204 = sadd.s32 %s203, 1
      %p207 = scmp.eq.s32.totalorder %s22, 1
      %p208 = scmp.ne.s32.totalorder %s203, %s205
      %p209 = scmp.eq.s32.totalorder %s22, 0
      %p210 = por %p208, %p209
      %p211 = scmp.ne.s32.totalorder %s203, %s205
      %p212 = scmp.eq.s32.totalorder %s27, 1
      %p213 = por %p211, %p212
      %p214 = scmp.ne.s32.totalorder %s205, %s206
      %p215 = scmp.eq.s32.totalorder %s27, 0
      %p216 = por %p214, %p215
      %p217 = scmp.ne.s32.totalorder %s205, %s206
      %p218 = scmp.eq.s32.totalorder %s28, 1
      %p219 = por %p217, %p218
      %p221 = scmp.ne.s32.totalorder %s206, %s220
      %p222 = scmp.eq.s32.totalorder %s28, 0
      %p223 = por %p221, %p222
      %s225 = sadd.s32 %s224, 1
      %p228 = scmp.eq.s32.totalorder %s22, 1
      %p229 = scmp.ne.s32.totalorder %s224, %s226
      %p230 = scmp.eq.s32.totalorder %s22, 0
      %p231 = por %p229, %p230
      %p232 = scmp.ne.s32.totalorder %s224, %s226
      %p233 = scmp.eq.s32.totalorder %s27, 1
      %p234 = por %p232, %p233
      %p235 = scmp.ne.s32.totalorder %s226, %s227
      %p236 = scmp.eq.s32.totalorder %s27, 0
      %p237 = por %p235, %p236
      %p238 = scmp.ne.s32.totalorder %s226, %s227
      %p239 = scmp.eq.s32.totalorder %s28, 1
      %p240 = por %p238, %p239
      %p242 = scmp.ne.s32.totalorder %s227, %s241
      %p243 = scmp.eq.s32.totalorder %s28, 0
      %p244 = por %p242, %p243
      %s246 = sadd.s32 %s245, 1
      %p249 = scmp.eq.s32.totalorder %s22, 1
      %p250 = scmp.ne.s32.totalorder %s245, %s247
      %p251 = scmp.eq.s32.totalorder %s22, 0
      %p252 = por %p250, %p251
      %p253 = scmp.ne.s32.totalorder %s245, %s247
      %p254 = scmp.eq.s32.totalorder %s27, 1
      %p255 = por %p253, %p254
      %p256 = scmp.ne.s32.totalorder %s247, %s248
      %p257 = scmp.eq.s32.totalorder %s27, 0
      %p258 = por %p256, %p257
      %p259 = scmp.ne.s32.totalorder %s247, %s248
      %p260 = scmp.eq.s32.totalorder %s28, 1
      %p261 = por %p259, %p260
      %p263 = scmp.ne.s32.totalorder %s248, %s262
      %p264 = scmp.eq.s32.totalorder %s28, 0
      %p265 = por %p263, %p264
      %s267 = sadd.s32 %s266, 1
      %p270 = scmp.eq.s32.totalorder %s22, 1
      %p271 = scmp.ne.s32.totalorder %s266, %s268
      %p272 = scmp.eq.s32.totalorder %s22, 0
      %p273 = por %p271, %p272
      %p274 = scmp.ne.s32.totalorder %s266, %s268
      %p275 = scmp.eq.s32.totalorder %s27, 1
      %p276 = por %p274, %p275
      %p277 = scmp.ne.s32.totalorder %s268, %s269
      %p278 = scmp.eq.s32.totalorder %s27, 0
      %p279 = por %p277, %p278
      %p280 = scmp.ne.s32.totalorder %s268, %s269
      %p281 = scmp.eq.s32.totalorder %s28, 1
      %p282 = por %p280, %p281
      %p284 = scmp.ne.s32.totalorder %s269, %s283
      %p285 = scmp.eq.s32.totalorder %s28, 0
      %p286 = por %p284, %p285
      %s288 = sadd.s32 %s287, 1
      %p291 = scmp.eq.s32.totalorder %s22, 1
      %p292 = scmp.ne.s32.totalorder %s287, %s289
      %p293 = scmp.eq.s32.totalorder %s22, 0
      %p294 = por %p292, %p293
      %p295 = scmp.ne.s32.totalorder %s287, %s289
      %p296 = scmp.eq.s32.totalorder %s27, 1
      %p297 = por %p295, %p296
      %p298 = scmp.ne.s32.totalorder %s289, %s290
      %p299 = scmp.eq.s32.totalorder %s27, 0
      %p300 = por %p298, %p299
      %p301 = scmp.ne.s32.totalorder %s289, %s290
      %p302 = scmp.eq.s32.totalorder %s28, 1
      %p303 = por %p301, %p302
      %p305 = scmp.ne.s32.totalorder %s290, %s304
      %p306 = scmp.eq.s32.totalorder %s28, 0
      %p307 = por %p305, %p306
      %s308 = ssub.s32 %s22, %s29
      %p309 = scmp.eq.s32.totalorder %s308, 0
      %s311 = sadd.s32 %s310, 1
      %s312 = scalar_select %p309, %s310, %s311
      %p315 = pneg %p309
      %p316 = scmp.eq.s32.totalorder %s22, 1
      %p317 = por %p315, %p316
      %p318 = scmp.ne.s32.totalorder %s310, %s313
      %p319 = scmp.eq.s32.totalorder %s22, 0
      %p320 = por %p318, %p319
      %p321 = scmp.ne.s32.totalorder %s310, %s313
      %p322 = scmp.eq.s32.totalorder %s27, 1
      %p323 = por %p321, %p322
      %p324 = scmp.ne.s32.totalorder %s313, %s314
      %p325 = scmp.eq.s32.totalorder %s27, 0
      %p326 = por %p324, %p325
      %p327 = scmp.ne.s32.totalorder %s313, %s314
      %p328 = scmp.eq.s32.totalorder %s28, 1
      %p329 = por %p327, %p328
      %p331 = scmp.ne.s32.totalorder %s314, %s330
      %p332 = scmp.eq.s32.totalorder %s28, 0
      %p333 = por %p331, %p332
      %p334 = scmp.le.s32.totalorder 1, %s22
      %p335 = scmp.lt.s32.totalorder %s22, 3
      %p336 = pnand %p334, %p335
      %p337 = pneg %p336
      // Predicated region
      $region9: #{clip_layer.1} parent=5 // pred_check
        _
      $region10: #{clip_layer.1} parent=5 // pred_check_branch
        %339 = sbr.rel (%p336) target = $region12
      $region11: #{clip_layer.1} parent=5 // pred_region
        %s340 = ssub.s32 %s22, 1
        // Predicated region
        $region13: #{clip_layer.1} parent=11 // pred_check
          %p341 = pneg %p69
        $region14: #{clip_layer.1} parent=11 // pred_check_branch
          %343 = sbr.rel (%p341) target = $region16
        $region15: #{clip_layer.1} parent=11 // pred_region
          _
        $region16: #{clip_layer.1} parent=11 // pred_fallthru
          _
        // Predicated region
        $region17: #{clip_layer.1} parent=11 // pred_check
          %p344 = pneg %p90
        $region18: #{clip_layer.1} parent=11 // pred_check_branch
          %346 = sbr.rel (%p344) target = $region20
        $region19: #{clip_layer.1} parent=11 // pred_region
          _
        $region20: #{clip_layer.1} parent=11 // pred_fallthru
          _
        // Predicated region
        $region21: #{clip_layer.1} parent=11 // pred_check
          %p347 = pneg %p111
        $region22: #{clip_layer.1} parent=11 // pred_check_branch
          %349 = sbr.rel (%p347) target = $region24
        $region23: #{clip_layer.1} parent=11 // pred_region
          _
        $region24: #{clip_layer.1} parent=11 // pred_fallthru
          _
        // Predicated region
        $region25: #{clip_layer.1} parent=11 // pred_check
          %p350 = pneg %p132
        $region26: #{clip_layer.1} parent=11 // pred_check_branch
          %352 = sbr.rel (%p350) target = $region28
        $region27: #{clip_layer.1} parent=11 // pred_region
          _
        $region28: #{clip_layer.1} parent=11 // pred_fallthru
          _
        // Predicated region
        $region29: #{clip_layer.1} parent=11 // pred_check
          %p353 = pneg %p153
        $region30: #{clip_layer.1} parent=11 // pred_check_branch
          %355 = sbr.rel (%p353) target = $region32
        $region31: #{clip_layer.1} parent=11 // pred_region
          _
        $region32: #{clip_layer.1} parent=11 // pred_fallthru
          _
        // Predicated region
        $region33: #{clip_layer.1} parent=11 // pred_check
          %p356 = pneg %p174
        $region34: #{clip_layer.1} parent=11 // pred_check_branch
          %358 = sbr.rel (%p356) target = $region36
        $region35: #{clip_layer.1} parent=11 // pred_region
          _
        $region36: #{clip_layer.1} parent=11 // pred_fallthru
          _
        // Predicated region
        $region37: #{clip_layer.1} parent=11 // pred_check
          %p359 = pneg %p195
        $region38: #{clip_layer.1} parent=11 // pred_check_branch
          %361 = sbr.rel (%p359) target = $region40
        $region39: #{clip_layer.1} parent=11 // pred_region
          _
        $region40: #{clip_layer.1} parent=11 // pred_fallthru
          _
        // Predicated region
        $region41: #{clip_layer.1} parent=11 // pred_check
          %p362 = pneg %p216
        $region42: #{clip_layer.1} parent=11 // pred_check_branch
          %364 = sbr.rel (%p362) target = $region44
        $region43: #{clip_layer.1} parent=11 // pred_region
          _
        $region44: #{clip_layer.1} parent=11 // pred_fallthru
          _
        // Predicated region
        $region45: #{clip_layer.1} parent=11 // pred_check
          %p365 = pneg %p237
        $region46: #{clip_layer.1} parent=11 // pred_check_branch
          %367 = sbr.rel (%p365) target = $region48
        $region47: #{clip_layer.1} parent=11 // pred_region
          _
        $region48: #{clip_layer.1} parent=11 // pred_fallthru
          _
        // Predicated region
        $region49: #{clip_layer.1} parent=11 // pred_check
          %p368 = pneg %p258
        $region50: #{clip_layer.1} parent=11 // pred_check_branch
          %370 = sbr.rel (%p368) target = $region52
        $region51: #{clip_layer.1} parent=11 // pred_region
          _
        $region52: #{clip_layer.1} parent=11 // pred_fallthru
          _
        // Predicated region
        $region53: #{clip_layer.1} parent=11 // pred_check
          %p371 = pneg %p279
        $region54: #{clip_layer.1} parent=11 // pred_check_branch
          %373 = sbr.rel (%p371) target = $region56
        $region55: #{clip_layer.1} parent=11 // pred_region
          _
        $region56: #{clip_layer.1} parent=11 // pred_fallthru
          _
        // Predicated region
        $region57: #{clip_layer.1} parent=11 // pred_check
          %p374 = pneg %p300
        $region58: #{clip_layer.1} parent=11 // pred_check_branch
          %376 = sbr.rel (%p374) target = $region60
        $region59: #{clip_layer.1} parent=11 // pred_region
          _
        $region60: #{clip_layer.1} parent=11 // pred_fallthru
          _
      $region12: #{clip_layer.1} parent=5 // pred_fallthru
        _
      %p377 = scmp.lt.s32.totalorder %s22, 2
      // Predicated region
      $region61: #{clip_layer.1} parent=5 // pred_check
        %p378 = pneg %p377
      $region62: #{clip_layer.1} parent=5 // pred_check_branch
        %380 = sbr.rel (%p378) target = $region64
      $region63: #{clip_layer.1} parent=5 // pred_region
        // Predicated region
        $region65: #{clip_layer.1} parent=63 // pred_check
          %p381 = pneg %p42
        $region66: #{clip_layer.1} parent=63 // pred_check_branch
          %383 = sbr.rel (%p381) target = $region68
        $region67: #{clip_layer.1} parent=63 // pred_region
          %p384 = scmp.lt.s32.totalorder %s22, 1
          %s385 = scalar_select %p384, %s22, 1
          %s386 = smul.addr %s385, 8
          %s387 = scalar_lea.vmem %s0, %s386
        $region68: #{clip_layer.1} parent=63 // pred_fallthru
          _
      $region64: #{clip_layer.1} parent=5 // pred_fallthru
        _
      %p388 = scmp.le.s32.totalorder 1, %s22
      %p389 = scmp.lt.s32.totalorder %s22, 3
      %p390 = pnand %p388, %p389
      %p391 = pneg %p390
      // Predicated region
      $region69: #{clip_layer.1} parent=5 // pred_check
        _
      $region70: #{clip_layer.1} parent=5 // pred_check_branch
        %393 = sbr.rel (%p390) target = $region72
      $region71: #{clip_layer.1} parent=5 // pred_region
        %s394 = ssub.s32 %s22, 1
        %p395 = scmp.lt.s32.totalorder %s27, 1
        %s396 = scalar_select %p395, %s27, 1
        %s397 = smul.addr %s396, 8
        %s398 = scalar_lea.vmem %s0, %s397
        %p399 = pneg %p48
        %p400 = pneg %p45
        %p401 = pneg %p69
        %p402 = pneg %p66
        %p403 = pneg %p90
        %p404 = pneg %p87
        %p405 = pneg %p111
        %p406 = pneg %p108
        %p407 = pneg %p132
        %p408 = pneg %p129
        %p409 = pneg %p153
        %p410 = pneg %p150
        %p411 = pneg %p174
        %p412 = pneg %p171
        %p413 = pneg %p195
        %p414 = pneg %p192
        %p415 = pneg %p216
        %p416 = pneg %p213
        %p417 = pneg %p237
        %p418 = pneg %p234
        %p419 = pneg %p258
        %p420 = pneg %p255
        %p421 = pneg %p279
        %p422 = pneg %p276
        %p423 = pneg %p300
        %p424 = pneg %p297
        %p425 = pneg %p326
        %p426 = pneg %p323
        %s427 = sand.u32 %s313, 1
        %s428 = scalar_lea.sflag [#allocation5], %s427
        %s429 = sand.u32 %s313, 1
        %s430 = smul.addr %s429, 8
        %s431 = scalar_lea.vmem [#allocation4], %s430
        %p432 = scmp.lt.s32.totalorder %s27, 1
        %s433 = scalar_select %p432, %s27, 1
        %s434 = smul.addr %s433, 8
        %s435 = scalar_lea.vmem %s0, %s434
        %v437 = vld [vmem:[%s435] sm:$0xff]
        %v438 = vld [vmem:[%s1] sm:$0x1]
        %v439 = vld [vmem:[%s2] sm:$0x1]
        %vm440 = vcmask 261120
        %v441 = vsel %vm440, %v437, 0.0
        %442 = vadd.xlane.f32.xlu0 %v441
        %v443 = vpop.xlane.xlu0 %442
        %v444 = vrcp.pop 32.0
        %v445 = vmul.f32 %v443, %v444
        %v446 = vmul.f32 %v437, %v437
        %v447 = vsel %vm440, %v446, 0.0
        %448 = vadd.xlane.f32.xlu0 %v447
        %v449 = vpop.xlane.xlu0 %448
        %v450 = vmul.f32 %v449, %v444
        %v451 = vmul.f32 %v445, %v445
        %v452 = vsub.f32 %v450, %v451
        %v453 = vsub.f32 %v437, %v445
        %v454 = vadd.f32 %v452, 1e-05
        %v455 = vrsqrt.pop %v454
        %v456 = vmul.f32 %v453, %v455
        %v458 = vlaneseq
        %v459 = vshrl.u32 %v458, 7
        %v460 = vsub.s32 0, %v459
        %v461 = vrot.slane %v438, %v460
        %v463 = vmul.f32 %v456, %v461
        %v465 = vlaneseq
        %v466 = vshrl.u32 %v465, 7
        %v467 = vsub.s32 0, %v466
        %v468 = vrot.slane %v439, %v467
        %v470 = vadd.f32 %v463, %v468
        %v471 = vpack.c.bf16 %v470, %v470
        %v472 = vld [vmem:[%s3] sm:$0xf]
        %v473 = vld [vmem:[%s3 + $0x4] sm:$0xf]
        %v474 = vld [vmem:[%s3 + $0x8] sm:$0xf]
        %v475 = vld [vmem:[%s3 + $0xc] sm:$0xf]
        %v476 = vld [vmem:[%s4] sm:$0x1]
        %v478 = vlaneseq
        %v479 = vshrl.u32 %v478, 7
        %v480 = vsub.s32 0, %v479
        %v481 = vrot.slane %v476, %v480
        %v487 = vunpack.c.l.b16 %v472
        %v488 = vunpack.c.l.b16 %v473
        %v489 = vunpack.c.l.b16 %v474
        %v490 = vunpack.c.l.b16 %v475
        %v491 = vpack.c.b16 %v488, %v487
        %v492 = vpack.c.b16 %v490, %v489
        %v496 = vsel %vm440, %v471, 0
        %498 = vmatprep.subr.bf16.mxu0 0
        %499 = vmatpush1.bf16.msra.mxu0 %v491
        %500 = vmatprep.subr.bf16.mxu0 0
        %501 = vmatpush1.bf16.msra.mxu0 %v492
        %502 = vmatprep.subr.bf16.mxu0 0
        %503 = vmatpush1.bf16.msra.mxu0 0
        %504 = vmatprep.subr.bf16.mxu0 0
        %505 = vmatpush1.bf16.msra.mxu0 0
        %506 = vmatprep.subr.bf16.mxu0 0
        %507 = vmatpush1.bf16.msra.mxu0 0
        %508 = vmatprep.subr.bf16.mxu0 0
        %509 = vmatpush1.bf16.msra.mxu0 0
        %510 = vmatprep.subr.bf16.mxu0 0
        %511 = vmatpush1.bf16.msra.mxu0 0
        %512 = vmatprep.subr.bf16.mxu0 0
        %513 = vmatpush1.bf16.msra.mxu0 0
        %514 = vmatprep.subr.bf16.mxu0 0
        %515 = vmatpush1.bf16.msra.mxu0 0
        %516 = vmatprep.subr.bf16.mxu0 0
        %517 = vmatpush1.bf16.msra.mxu0 0
        %518 = vmatprep.subr.bf16.mxu0 0
        %519 = vmatpush1.bf16.msra.mxu0 0
        %520 = vmatprep.subr.bf16.mxu0 0
        %521 = vmatpush1.bf16.msra.mxu0 0
        %522 = vmatprep.subr.bf16.mxu0 0
        %523 = vmatpush1.bf16.msra.mxu0 0
        %524 = vmatprep.subr.bf16.mxu0 0
        %525 = vmatpush1.bf16.msra.mxu0 0
        %526 = vmatprep.subr.bf16.mxu0 0
        %527 = vmatpush1.bf16.msra.mxu0 0
        %528 = vmatprep.subr.bf16.mxu0 0
        %529 = vmatpush1.bf16.msra.mxu0 0
        %530 = vmatprep.mubr.bf16.mxu0 0
        %531 = vmatmul.mubr.bf16.gmra.mrb[0].mxu0 %v496
        %v532 = vpop.f32.mrb[0].mxu0
        %v533 = vadd.f32 %v481, %v532
        %v534 = vpop.f32.mrb[0].mxu0
        %v535 = vpop.f32.mrb[0].mxu0
        %v536 = vpop.f32.mrb[0].mxu0
        %537 = vdwg.mxu0
        %v538 = vpack.c.bf16 %v533, %v533
        %vm539 = vcmask 781312
        %540 = vst.msk [vmem:[#allocation2] sm:$0xf] %vm539, %v538
        %v541 = vld [vmem:[#allocation2] sm:$0xf]
        %v543 = vunpack.c.l.b16 %v541
        %v544 = vpack.c.b16 %v543, %v543
        %545 = vrot.lane.b32.xlu0 %v544, 96
        %v546 = vpop.permute.xlu0 %545
        %vm547 = vcmask 64512
        %v549 = vsel %vm547, %v541, 0
        %v552 = vsel %vm547, %v546, 0
        %554 = vmatprep.subr.bf16.mxu0 0
        %555 = vmatpush1.bf16.xpose.msra.mxu0 %v552
        %556 = vmatprep.subr.bf16.mxu0 0
        %557 = vmatpush1.bf16.xpose.msra.mxu0 0
        %558 = vmatprep.subr.bf16.mxu0 0
        %559 = vmatpush1.bf16.xpose.msra.mxu0 0
        %560 = vmatprep.subr.bf16.mxu0 0
        %561 = vmatpush1.bf16.xpose.msra.mxu0 0
        %562 = vmatprep.subr.bf16.mxu0 0
        %563 = vmatpush1.bf16.xpose.msra.mxu0 0
        %564 = vmatprep.subr.bf16.mxu0 0
        %565 = vmatpush1.bf16.xpose.msra.mxu0 0
        %566 = vmatprep.subr.bf16.mxu0 0
        %567 = vmatpush1.bf16.xpose.msra.mxu0 0
        %568 = vmatprep.subr.bf16.mxu0 0
        %569 = vmatpush1.bf16.xpose.msra.mxu0 0
        %570 = vmatprep.subr.bf16.mxu0 0
        %571 = vmatpush1.bf16.xpose.msra.mxu0 0
        %572 = vmatprep.subr.bf16.mxu0 0
        %573 = vmatpush1.bf16.xpose.msra.mxu0 0
        %574 = vmatprep.subr.bf16.mxu0 0
        %575 = vmatpush1.bf16.xpose.msra.mxu0 0
        %576 = vmatprep.subr.bf16.mxu0 0
        %577 = vmatpush1.bf16.xpose.msra.mxu0 0
        %578 = vmatprep.subr.bf16.mxu0 0
        %579 = vmatpush1.bf16.xpose.msra.mxu0 0
        %580 = vmatprep.subr.bf16.mxu0 0
        %581 = vmatpush1.bf16.xpose.msra.mxu0 0
        %582 = vmatprep.subr.bf16.mxu0 0
        %583 = vmatpush1.bf16.xpose.msra.mxu0 0
        %584 = vmatprep.subr.bf16.mxu0 0
        %585 = vmatpush1.bf16.xpose.msra.mxu0 0
        %586 = vmatprep.mubr.bf16.mxu0 0
        %587 = vmatmul.mubr.bf16.gmra.mrb[0].mxu0 %v549
        %v588 = vpop.f32.mrb[0].mxu0
        %v589 = vadd.f32 0.0, %v588
        %v590 = vpop.f32.mrb[0].mxu0
        %v591 = vpop.f32.mrb[0].mxu0
        %v592 = vpop.f32.mrb[0].mxu0
        %593 = vdwg.mxu0
        %v594 = vsel %vm547, %v589, -inf
        %595 = vmax.xlane.f32.xlu0 %v594
        %v596 = vpop.xlane.xlu0 %595
        %v597 = vsub.f32 %v589, %v596
        %v598 = vmul.f32 %v597, 1.442695
        %v599 = vpow.pop %v598
        %v600 = vsel %vm547, %v599, 0.0
        %601 = vadd.xlane.f32.xlu0 %v600
        %v602 = vpop.xlane.xlu0 %601
        %v603 = vpack.c.bf16 %v599, %v599
        %604 = vrot.lane.b32.xlu0 %v544, 64
        %v605 = vpop.permute.xlu0 %604
        %v607 = vsel %vm547, %v603, 0
        %vm609 = vcmask 1043456
        %v611 = vsel %vm609, %v605, 0
        %613 = vmatprep.subr.bf16.mxu0 0
        %614 = vmatpush1.bf16.msra.mxu0 %v611
        %615 = vmatprep.subr.bf16.mxu0 0
        %616 = vmatpush1.bf16.msra.mxu0 0
        %617 = vmatprep.subr.bf16.mxu0 0
        %618 = vmatpush1.bf16.msra.mxu0 0
        %619 = vmatprep.subr.bf16.mxu0 0
        %620 = vmatpush1.bf16.msra.mxu0 0
        %621 = vmatprep.subr.bf16.mxu0 0
        %622 = vmatpush1.bf16.msra.mxu0 0
        %623 = vmatprep.subr.bf16.mxu0 0
        %624 = vmatpush1.bf16.msra.mxu0 0
        %625 = vmatprep.subr.bf16.mxu0 0
        %626 = vmatpush1.bf16.msra.mxu0 0
        %627 = vmatprep.subr.bf16.mxu0 0
        %628 = vmatpush1.bf16.msra.mxu0 0
        %629 = vmatprep.subr.bf16.mxu0 0
        %630 = vmatpush1.bf16.msra.mxu0 0
        %631 = vmatprep.subr.bf16.mxu0 0
        %632 = vmatpush1.bf16.msra.mxu0 0
        %633 = vmatprep.subr.bf16.mxu0 0
        %634 = vmatpush1.bf16.msra.mxu0 0
        %635 = vmatprep.subr.bf16.mxu0 0
        %636 = vmatpush1.bf16.msra.mxu0 0
        %637 = vmatprep.subr.bf16.mxu0 0
        %638 = vmatpush1.bf16.msra.mxu0 0
        %639 = vmatprep.subr.bf16.mxu0 0
        %640 = vmatpush1.bf16.msra.mxu0 0
        %641 = vmatprep.subr.bf16.mxu0 0
        %642 = vmatpush1.bf16.msra.mxu0 0
        %643 = vmatprep.subr.bf16.mxu0 0
        %644 = vmatpush1.bf16.msra.mxu0 0
        %645 = vmatprep.mubr.bf16.mxu0 0
        %646 = vmatmul.mubr.bf16.gmra.mrb[0].mxu0 %v607
        %v647 = vpop.f32.mrb[0].mxu0
        %v648 = vadd.f32 0.0, %v647
        %v649 = vpop.f32.mrb[0].mxu0
        %v650 = vpop.f32.mrb[0].mxu0
        %v651 = vpop.f32.mrb[0].mxu0
        %652 = vdwg.mxu0
        %v653 = vrcp.pop %v602
        %v654 = vmul.f32 %v648, %v653
        %v655 = vpack.c.bf16 %v654, %v654
        %vm656 = vcmask 60416
        %657 = vst.msk [vmem:[#allocation3] sm:$0xf] %vm656, %v655
        %v658 = vld [vmem:[#allocation2] sm:$0xf]
        %v660 = vunpack.c.l.b16 %v658
        %v661 = vpack.c.b16 %v660, %v660
        %662 = vrot.lane.b32.xlu0 %v661, 120
        %v663 = vpop.permute.xlu0 %662
        %664 = vrot.lane.b32.xlu0 %v661, 88
        %v665 = vpop.permute.xlu0 %664
        %v667 = vsel %vm547, %v663, 0
        %v670 = vsel %vm547, %v665, 0
        %672 = vmatprep.subr.bf16.mxu0 0
        %673 = vmatpush1.bf16.xpose.msra.mxu0 %v670
        %674 = vmatprep.subr.bf16.mxu0 0
        %675 = vmatpush1.bf16.xpose.msra.mxu0 0
        %676 = vmatprep.subr.bf16.mxu0 0
        %677 = vmatpush1.bf16.xpose.msra.mxu0 0
        %678 = vmatprep.subr.bf16.mxu0 0
        %679 = vmatpush1.bf16.xpose.msra.mxu0 0
        %680 = vmatprep.subr.bf16.mxu0 0
        %681 = vmatpush1.bf16.xpose.msra.mxu0 0
        %682 = vmatprep.subr.bf16.mxu0 0
        %683 = vmatpush1.bf16.xpose.msra.mxu0 0
        %684 = vmatprep.subr.bf16.mxu0 0
        %685 = vmatpush1.bf16.xpose.msra.mxu0 0
        %686 = vmatprep.subr.bf16.mxu0 0
        %687 = vmatpush1.bf16.xpose.msra.mxu0 0
        %688 = vmatprep.subr.bf16.mxu0 0
        %689 = vmatpush1.bf16.xpose.msra.mxu0 0
        %690 = vmatprep.subr.bf16.mxu0 0
        %691 = vmatpush1.bf16.xpose.msra.mxu0 0
        %692 = vmatprep.subr.bf16.mxu0 0
        %693 = vmatpush1.bf16.xpose.msra.mxu0 0
        %694 = vmatprep.subr.bf16.mxu0 0
        %695 = vmatpush1.bf16.xpose.msra.mxu0 0
        %696 = vmatprep.subr.bf16.mxu0 0
        %697 = vmatpush1.bf16.xpose.msra.mxu0 0
        %698 = vmatprep.subr.bf16.mxu0 0
        %699 = vmatpush1.bf16.xpose.msra.mxu0 0
        %700 = vmatprep.subr.bf16.mxu0 0
        %701 = vmatpush1.bf16.xpose.msra.mxu0 0
        %702 = vmatprep.subr.bf16.mxu0 0
        %703 = vmatpush1.bf16.xpose.msra.mxu0 0
        %704 = vmatprep.mubr.bf16.mxu0 0
        %705 = vmatmul.mubr.bf16.gmra.mrb[0].mxu0 %v667
        %v706 = vpop.f32.mrb[0].mxu0
        %v707 = vadd.f32 0.0, %v706
        %v708 = vpop.f32.mrb[0].mxu0
        %v709 = vpop.f32.mrb[0].mxu0
        %v710 = vpop.f32.mrb[0].mxu0
        %711 = vdwg.mxu0
        %v712 = vsel %vm547, %v707, -inf
        %713 = vmax.xlane.f32.xlu0 %v712
        %v714 = vpop.xlane.xlu0 %713
        %v715 = vsub.f32 %v707, %v714
        %v716 = vmul.f32 %v715, 1.442695
        %v717 = vpow.pop %v716
        %v718 = vsel %vm547, %v717, 0.0
        %719 = vadd.xlane.f32.xlu0 %v718
        %v720 = vpop.xlane.xlu0 %719
        %v721 = vpack.c.bf16 %v717, %v717
        %722 = vrot.lane.b32.xlu0 %v661, 56
        %v723 = vpop.permute.xlu0 %722
        %v725 = vsel %vm547, %v721, 0
        %v728 = vsel %vm609, %v723, 0
        %730 = vmatprep.subr.bf16.mxu0 0
        %731 = vmatpush1.bf16.msra.mxu0 %v728
        %732 = vmatprep.subr.bf16.mxu0 0
        %733 = vmatpush1.bf16.msra.mxu0 0
        %734 = vmatprep.subr.bf16.mxu0 0
        %735 = vmatpush1.bf16.msra.mxu0 0
        %736 = vmatprep.subr.bf16.mxu0 0
        %737 = vmatpush1.bf16.msra.mxu0 0
        %738 = vmatprep.subr.bf16.mxu0 0
        %739 = vmatpush1.bf16.msra.mxu0 0
        %740 = vmatprep.subr.bf16.mxu0 0
        %741 = vmatpush1.bf16.msra.mxu0 0
        %742 = vmatprep.subr.bf16.mxu0 0
        %743 = vmatpush1.bf16.msra.mxu0 0
        %744 = vmatprep.subr.bf16.mxu0 0
        %745 = vmatpush1.bf16.msra.mxu0 0
        %746 = vmatprep.subr.bf16.mxu0 0
        %747 = vmatpush1.bf16.msra.mxu0 0
        %748 = vmatprep.subr.bf16.mxu0 0
        %749 = vmatpush1.bf16.msra.mxu0 0
        %750 = vmatprep.subr.bf16.mxu0 0
        %751 = vmatpush1.bf16.msra.mxu0 0
        %752 = vmatprep.subr.bf16.mxu0 0
        %753 = vmatpush1.bf16.msra.mxu0 0
        %754 = vmatprep.subr.bf16.mxu0 0
        %755 = vmatpush1.bf16.msra.mxu0 0
        %756 = vmatprep.subr.bf16.mxu0 0
        %757 = vmatpush1.bf16.msra.mxu0 0
        %758 = vmatprep.subr.bf16.mxu0 0
        %759 = vmatpush1.bf16.msra.mxu0 0
        %760 = vmatprep.subr.bf16.mxu0 0
        %761 = vmatpush1.bf16.msra.mxu0 0
        %762 = vmatprep.mubr.bf16.mxu0 0
        %763 = vmatmul.mubr.bf16.gmra.mrb[0].mxu0 %v725
        %v764 = vpop.f32.mrb[0].mxu0
        %v765 = vadd.f32 0.0, %v764
        %v766 = vpop.f32.mrb[0].mxu0
        %v767 = vpop.f32.mrb[0].mxu0
        %v768 = vpop.f32.mrb[0].mxu0
        %769 = vdwg.mxu0
        %v770 = vrcp.pop %v720
        %v771 = vmul.f32 %v765, %v770
        %v772 = vpack.c.bf16 %v771, %v771
        %v774 = vunpack.c.l.b16 %v772
        %v775 = vpack.c.b16 %v774, %v774
        %776 = vrot.lane.b32.xlu0 %v775, 8
        %v777 = vpop.permute.xlu0 %776
        %vm779 = vcmask 126016
        %780 = vst.msk [vmem:[#allocation3] sm:$0xf] %vm779, %v777
        %v781 = vld [vmem:[#allocation2] sm:$0xf]
        %v783 = vunpack.c.l.b16 %v781
        %v784 = vpack.c.b16 %v783, %v783
        %785 = vrot.lane.b32.xlu0 %v784, 112
        %v786 = vpop.permute.xlu0 %785
        %787 = vrot.lane.b32.xlu0 %v784, 80
        %v788 = vpop.permute.xlu0 %787
        %v790 = vsel %vm547, %v786, 0
        %v793 = vsel %vm547, %v788, 0
        %795 = vmatprep.subr.bf16.mxu0 0
        %796 = vmatpush1.bf16.xpose.msra.mxu0 %v793
        %797 = vmatprep.subr.bf16.mxu0 0
        %798 = vmatpush1.bf16.xpose.msra.mxu0 0
        %799 = vmatprep.subr.bf16.mxu0 0
        %800 = vmatpush1.bf16.xpose.msra.mxu0 0
        %801 = vmatprep.subr.bf16.mxu0 0
        %802 = vmatpush1.bf16.xpose.msra.mxu0 0
        %803 = vmatprep.subr.bf16.mxu0 0
        %804 = vmatpush1.bf16.xpose.msra.mxu0 0
        %805 = vmatprep.subr.bf16.mxu0 0
        %806 = vmatpush1.bf16.xpose.msra.mxu0 0
        %807 = vmatprep.subr.bf16.mxu0 0
        %808 = vmatpush1.bf16.xpose.msra.mxu0 0
        %809 = vmatprep.subr.bf16.mxu0 0
        %810 = vmatpush1.bf16.xpose.msra.mxu0 0
        %811 = vmatprep.subr.bf16.mxu0 0
        %812 = vmatpush1.bf16.xpose.msra.mxu0 0
        %813 = vmatprep.subr.bf16.mxu0 0
        %814 = vmatpush1.bf16.xpose.msra.mxu0 0
        %815 = vmatprep.subr.bf16.mxu0 0
        %816 = vmatpush1.bf16.xpose.msra.mxu0 0
        %817 = vmatprep.subr.bf16.mxu0 0
        %818 = vmatpush1.bf16.xpose.msra.mxu0 0
        %819 = vmatprep.subr.bf16.mxu0 0
        %820 = vmatpush1.bf16.xpose.msra.mxu0 0
        %821 = vmatprep.subr.bf16.mxu0 0
        %822 = vmatpush1.bf16.xpose.msra.mxu0 0
        %823 = vmatprep.subr.bf16.mxu0 0
        %824 = vmatpush1.bf16.xpose.msra.mxu0 0
        %825 = vmatprep.subr.bf16.mxu0 0
        %826 = vmatpush1.bf16.xpose.msra.mxu0 0
        %827 = vmatprep.mubr.bf16.mxu0 0
        %828 = vmatmul.mubr.bf16.gmra.mrb[0].mxu0 %v790
        %v829 = vpop.f32.mrb[0].mxu0
        %v830 = vadd.f32 0.0, %v829
        %v831 = vpop.f32.mrb[0].mxu0
        %v832 = vpop.f32.mrb[0].mxu0
        %v833 = vpop.f32.mrb[0].mxu0
        %834 = vdwg.mxu0
        %v835 = vsel %vm547, %v830, -inf
        %836 = vmax.xlane.f32.xlu0 %v835
        %v837 = vpop.xlane.xlu0 %836
        %v838 = vsub.f32 %v830, %v837
        %v839 = vmul.f32 %v838, 1.442695
        %v840 = vpow.pop %v839
        %v841 = vsel %vm547, %v840, 0.0
        %842 = vadd.xlane.f32.xlu0 %v841
        %v843 = vpop.xlane.xlu0 %842
        %v844 = vpack.c.bf16 %v840, %v840
        %845 = vrot.lane.b32.xlu0 %v784, 48
        %v846 = vpop.permute.xlu0 %845
        %v848 = vsel %vm547, %v844, 0
        %v851 = vsel %vm609, %v846, 0
        %853 = vmatprep.subr.bf16.mxu0 0
        %854 = vmatpush1.bf16.msra.mxu0 %v851
        %855 = vmatprep.subr.bf16.mxu0 0
        %856 = vmatpush1.bf16.msra.mxu0 0
        %857 = vmatprep.subr.bf16.mxu0 0
        %858 = vmatpush1.bf16.msra.mxu0 0
        %859 = vmatprep.subr.bf16.mxu0 0
        %860 = vmatpush1.bf16.msra.mxu0 0
        %861 = vmatprep.subr.bf16.mxu0 0
        %862 = vmatpush1.bf16.msra.mxu0 0
        %863 = vmatprep.subr.bf16.mxu0 0
        %864 = vmatpush1.bf16.msra.mxu0 0
        %865 = vmatprep.subr.bf16.mxu0 0
        %866 = vmatpush1.bf16.msra.mxu0 0
        %867 = vmatprep.subr.bf16.mxu0 0
        %868 = vmatpush1.bf16.msra.mxu0 0
        %869 = vmatprep.subr.bf16.mxu0 0
        %870 = vmatpush1.bf16.msra.mxu0 0
        %871 = vmatprep.subr.bf16.mxu0 0
        %872 = vmatpush1.bf16.msra.mxu0 0
        %873 = vmatprep.subr.bf16.mxu0 0
        %874 = vmatpush1.bf16.msra.mxu0 0
        %875 = vmatprep.subr.bf16.mxu0 0
        %876 = vmatpush1.bf16.msra.mxu0 0
        %877 = vmatprep.subr.bf16.mxu0 0
        %878 = vmatpush1.bf16.msra.mxu0 0
        %879 = vmatprep.subr.bf16.mxu0 0
        %880 = vmatpush1.bf16.msra.mxu0 0
        %881 = vmatprep.subr.bf16.mxu0 0
        %882 = vmatpush1.bf16.msra.mxu0 0
        %883 = vmatprep.subr.bf16.mxu0 0
        %884 = vmatpush1.bf16.msra.mxu0 0
        %885 = vmatprep.mubr.bf16.mxu0 0
        %886 = vmatmul.mubr.bf16.gmra.mrb[0].mxu0 %v848
        %v887 = vpop.f32.mrb[0].mxu0
        %v888 = vadd.f32 0.0, %v887
        %v889 = vpop.f32.mrb[0].mxu0
        %v890 = vpop.f32.mrb[0].mxu0
        %v891 = vpop.f32.mrb[0].mxu0
        %892 = vdwg.mxu0
        %v893 = vrcp.pop %v843
        %v894 = vmul.f32 %v888, %v893
        %v895 = vpack.c.bf16 %v894, %v894
        %v897 = vunpack.c.l.b16 %v895
        %v898 = vpack.c.b16 %v897, %v897
        %899 = vrot.lane.b32.xlu0 %v898, 16
        %v900 = vpop.permute.xlu0 %899
        %vm902 = vcmask 191616
        %903 = vst.msk [vmem:[#allocation3] sm:$0xf] %vm902, %v900
        %v904 = vld [vmem:[#allocation2] sm:$0xf]
        %v906 = vunpack.c.l.b16 %v904
        %v907 = vpack.c.b16 %v906, %v906
        %908 = vrot.lane.b32.xlu0 %v907, 104
        %v909 = vpop.permute.xlu0 %908
        %910 = vrot.lane.b32.xlu0 %v907, 72
        %v911 = vpop.permute.xlu0 %910
        %v913 = vsel %vm547, %v909, 0
        %v916 = vsel %vm547, %v911, 0
        %918 = vmatprep.subr.bf16.mxu0 0
        %919 = vmatpush1.bf16.xpose.msra.mxu0 %v916
        %920 = vmatprep.subr.bf16.mxu0 0
        %921 = vmatpush1.bf16.xpose.msra.mxu0 0
        %922 = vmatprep.subr.bf16.mxu0 0
        %923 = vmatpush1.bf16.xpose.msra.mxu0 0
        %924 = vmatprep.subr.bf16.mxu0 0
        %925 = vmatpush1.bf16.xpose.msra.mxu0 0
        %926 = vmatprep.subr.bf16.mxu0 0
        %927 = vmatpush1.bf16.xpose.msra.mxu0 0
        %928 = vmatprep.subr.bf16.mxu0 0
        %929 = vmatpush1.bf16.xpose.msra.mxu0 0
        %930 = vmatprep.subr.bf16.mxu0 0
        %931 = vmatpush1.bf16.xpose.msra.mxu0 0
        %932 = vmatprep.subr.bf16.mxu0 0
        %933 = vmatpush1.bf16.xpose.msra.mxu0 0
        %934 = vmatprep.subr.bf16.mxu0 0
        %935 = vmatpush1.bf16.xpose.msra.mxu0 0
        %936 = vmatprep.subr.bf16.mxu0 0
        %937 = vmatpush1.bf16.xpose.msra.mxu0 0
        %938 = vmatprep.subr.bf16.mxu0 0
        %939 = vmatpush1.bf16.xpose.msra.mxu0 0
        %940 = vmatprep.subr.bf16.mxu0 0
        %941 = vmatpush1.bf16.xpose.msra.mxu0 0
        %942 = vmatprep.subr.bf16.mxu0 0
        %943 = vmatpush1.bf16.xpose.msra.mxu0 0
        %944 = vmatprep.subr.bf16.mxu0 0
        %945 = vmatpush1.bf16.xpose.msra.mxu0 0
        %946 = vmatprep.subr.bf16.mxu0 0
        %947 = vmatpush1.bf16.xpose.msra.mxu0 0
        %948 = vmatprep.subr.bf16.mxu0 0
        %949 = vmatpush1.bf16.xpose.msra.mxu0 0
        %950 = vmatprep.mubr.bf16.mxu0 0
        %951 = vmatmul.mubr.bf16.gmra.mrb[0].mxu0 %v913
        %v952 = vpop.f32.mrb[0].mxu0
        %v953 = vadd.f32 0.0, %v952
        %v954 = vpop.f32.mrb[0].mxu0
        %v955 = vpop.f32.mrb[0].mxu0
        %v956 = vpop.f32.mrb[0].mxu0
        %957 = vdwg.mxu0
        %v958 = vsel %vm547, %v953, -inf
        %959 = vmax.xlane.f32.xlu0 %v958
        %v960 = vpop.xlane.xlu0 %959
        %v961 = vsub.f32 %v953, %v960
        %v962 = vmul.f32 %v961, 1.442695
        %v963 = vpow.pop %v962
        %v964 = vsel %vm547, %v963, 0.0
        %965 = vadd.xlane.f32.xlu0 %v964
        %v966 = vpop.xlane.xlu0 %965
        %v967 = vpack.c.bf16 %v963, %v963
        %968 = vrot.lane.b32.xlu0 %v907, 40
        %v969 = vpop.permute.xlu0 %968
        %v971 = vsel %vm547, %v967, 0
        %v974 = vsel %vm609, %v969, 0
        %976 = vmatprep.subr.bf16.mxu0 0
        %977 = vmatpush1.bf16.msra.mxu0 %v974
        %978 = vmatprep.subr.bf16.mxu0 0
        %979 = vmatpush1.bf16.msra.mxu0 0
        %980 = vmatprep.subr.bf16.mxu0 0
        %981 = vmatpush1.bf16.msra.mxu0 0
        %982 = vmatprep.subr.bf16.mxu0 0
        %983 = vmatpush1.bf16.msra.mxu0 0
        %984 = vmatprep.subr.bf16.mxu0 0
        %985 = vmatpush1.bf16.msra.mxu0 0
        %986 = vmatprep.subr.bf16.mxu0 0
        %987 = vmatpush1.bf16.msra.mxu0 0
        %988 = vmatprep.subr.bf16.mxu0 0
        %989 = vmatpush1.bf16.msra.mxu0 0
        %990 = vmatprep.subr.bf16.mxu0 0
        %991 = vmatpush1.bf16.msra.mxu0 0
        %992 = vmatprep.subr.bf16.mxu0 0
        %993 = vmatpush1.bf16.msra.mxu0 0
        %994 = vmatprep.subr.bf16.mxu0 0
        %995 = vmatpush1.bf16.msra.mxu0 0
        %996 = vmatprep.subr.bf16.mxu0 0
        %997 = vmatpush1.bf16.msra.mxu0 0
        %998 = vmatprep.subr.bf16.mxu0 0
        %999 = vmatpush1.bf16.msra.mxu0 0
        %1000 = vmatprep.subr.bf16.mxu0 0
        %1001 = vmatpush1.bf16.msra.mxu0 0
        %1002 = vmatprep.subr.bf16.mxu0 0
        %1003 = vmatpush1.bf16.msra.mxu0 0
        %1004 = vmatprep.subr.bf16.mxu0 0
        %1005 = vmatpush1.bf16.msra.mxu0 0
        %1006 = vmatprep.subr.bf16.mxu0 0
        %1007 = vmatpush1.bf16.msra.mxu0 0
        %1008 = vmatprep.mubr.bf16.mxu0 0
        %1009 = vmatmul.mubr.bf16.gmra.mrb[0].mxu0 %v971
        %v1010 = vpop.f32.mrb[0].mxu0
        %v1011 = vadd.f32 0.0, %v1010
        %v1012 = vpop.f32.mrb[0].mxu0
        %v1013 = vpop.f32.mrb[0].mxu0
        %v1014 = vpop.f32.mrb[0].mxu0
        %1015 = vdwg.mxu0
        %v1016 = vrcp.pop %v966
        %v1017 = vmul.f32 %v1011, %v1016
        %v1018 = vpack.c.bf16 %v1017, %v1017
        %v1020 = vunpack.c.l.b16 %v1018
        %v1021 = vpack.c.b16 %v1020, %v1020
        %1022 = vrot.lane.b32.xlu0 %v1021, 24
        %v1023 = vpop.permute.xlu0 %1022
        %vm1025 = vcmask 257216
        %1026 = vst.msk [vmem:[#allocation3] sm:$0xf] %vm1025, %v1023
        %v1027 = vld [vmem:[#allocation3] sm:$0xf]
        %v1028 = vld [vmem:[%s5] sm:$0xf]
        %v1029 = vld [vmem:[%s5 + $0x4] sm:$0xf]
        %v1030 = vld [vmem:[%s5 + $0x8] sm:$0xf]
        %v1031 = vld [vmem:[%s5 + $0xc] sm:$0xf]
        %v1032 = vld [vmem:[%s6] sm:$0x1]
        %v1034 = vlaneseq
        %v1035 = vshrl.u32 %v1034, 7
        %v1036 = vsub.s32 0, %v1035
        %v1037 = vrot.slane %v1032, %v1036
        %v1043 = vunpack.c.l.b16 %v1028
        %v1044 = vunpack.c.l.b16 %v1029
        %v1045 = vunpack.c.l.b16 %v1030
        %v1046 = vunpack.c.l.b16 %v1031
        %v1047 = vpack.c.b16 %v1044, %v1043
        %v1048 = vpack.c.b16 %v1046, %v1045
        %v1052 = vsel %vm440, %v1027, 0
        %1054 = vmatprep.subr.bf16.mxu0 0
        %1055 = vmatpush1.bf16.msra.mxu0 %v1047
        %1056 = vmatprep.subr.bf16.mxu0 0
        %1057 = vmatpush1.bf16.msra.mxu0 %v1048
        %1058 = vmatprep.subr.bf16.mxu0 0
        %1059 = vmatpush1.bf16.msra.mxu0 0
        %1060 = vmatprep.subr.bf16.mxu0 0
        %1061 = vmatpush1.bf16.msra.mxu0 0
        %1062 = vmatprep.subr.bf16.mxu0 0
        %1063 = vmatpush1.bf16.msra.mxu0 0
        %1064 = vmatprep.subr.bf16.mxu0 0
        %1065 = vmatpush1.bf16.msra.mxu0 0
        %1066 = vmatprep.subr.bf16.mxu0 0
        %1067 = vmatpush1.bf16.msra.mxu0 0
        %1068 = vmatprep.subr.bf16.mxu0 0
        %1069 = vmatpush1.bf16.msra.mxu0 0
        %1070 = vmatprep.subr.bf16.mxu0 0
        %1071 = vmatpush1.bf16.msra.mxu0 0
        %1072 = vmatprep.subr.bf16.mxu0 0
        %1073 = vmatpush1.bf16.msra.mxu0 0
        %1074 = vmatprep.subr.bf16.mxu0 0
        %1075 = vmatpush1.bf16.msra.mxu0 0
        %1076 = vmatprep.subr.bf16.mxu0 0
        %1077 = vmatpush1.bf16.msra.mxu0 0
        %1078 = vmatprep.subr.bf16.mxu0 0
        %1079 = vmatpush1.bf16.msra.mxu0 0
        %1080 = vmatprep.subr.bf16.mxu0 0
        %1081 = vmatpush1.bf16.msra.mxu0 0
        %1082 = vmatprep.subr.bf16.mxu0 0
        %1083 = vmatpush1.bf16.msra.mxu0 0
        %1084 = vmatprep.subr.bf16.mxu0 0
        %1085 = vmatpush1.bf16.msra.mxu0 0
        %1086 = vmatprep.mubr.bf16.mxu0 0
        %1087 = vmatmul.mubr.bf16.gmra.mrb[0].mxu0 %v1052
        %v1088 = vpop.f32.mrb[0].mxu0
        %v1089 = vadd.f32 %v1037, %v1088
        %v1090 = vpop.f32.mrb[0].mxu0
        %v1091 = vpop.f32.mrb[0].mxu0
        %v1092 = vpop.f32.mrb[0].mxu0
        %1093 = vdwg.mxu0
        %v1094 = vadd.f32 %v437, %v1089
        %v1095 = vld [vmem:[%s7] sm:$0x1]
        %v1096 = vld [vmem:[%s8] sm:$0x1]
        %v1097 = vsel %vm440, %v1094, 0.0
        %1098 = vadd.xlane.f32.xlu0 %v1097
        %v1099 = vpop.xlane.xlu0 %1098
        %v1100 = vmul.f32 %v1099, %v444
        %v1101 = vmul.f32 %v1094, %v1094
        %v1102 = vsel %vm440, %v1101, 0.0
        %1103 = vadd.xlane.f32.xlu0 %v1102
        %v1104 = vpop.xlane.xlu0 %1103
        %v1105 = vmul.f32 %v1104, %v444
        %v1106 = vmul.f32 %v1100, %v1100
        %v1107 = vsub.f32 %v1105, %v1106
        %v1108 = vsub.f32 %v1094, %v1100
        %v1109 = vadd.f32 %v1107, 1e-05
        %v1110 = vrsqrt.pop %v1109
        %v1111 = vmul.f32 %v1108, %v1110
        %v1113 = vlaneseq
        %v1114 = vshrl.u32 %v1113, 7
        %v1115 = vsub.s32 0, %v1114
        %v1116 = vrot.slane %v1095, %v1115
        %v1118 = vmul.f32 %v1111, %v1116
        %v1120 = vlaneseq
        %v1121 = vshrl.u32 %v1120, 7
        %v1122 = vsub.s32 0, %v1121
        %v1123 = vrot.slane %v1096, %v1122
        %v1125 = vadd.f32 %v1118, %v1123
        %v1126 = vpack.c.bf16 %v1125, %v1125
        %v1127 = vld [vmem:[%s9] sm:$0xf]
        %v1128 = vld [vmem:[%s9 + $0x4] sm:$0xf]
        %v1129 = vld [vmem:[%s9 + $0x8] sm:$0xf]
        %v1130 = vld [vmem:[%s9 + $0xc] sm:$0xf]
        %v1131 = vld [vmem:[%s10] sm:$0x1]
        %v1133 = vlaneseq
        %v1134 = vshrl.u32 %v1133, 7
        %v1135 = vsub.s32 0, %v1134
        %v1136 = vrot.slane %v1131, %v1135
        %v1142 = vunpack.c.l.b16 %v1127
        %v1143 = vunpack.c.l.b16 %v1128
        %v1144 = vunpack.c.l.b16 %v1129
        %v1145 = vunpack.c.l.b16 %v1130
        %v1146 = vpack.c.b16 %v1143, %v1142
        %v1147 = vpack.c.b16 %v1145, %v1144
        %v1151 = vsel %vm440, %v1126, 0
        %1153 = vmatprep.subr.bf16.mxu0 0
        %1154 = vmatpush1.bf16.msra.mxu0 %v1146
        %1155 = vmatprep.subr.bf16.mxu0 0
        %1156 = vmatpush1.bf16.msra.mxu0 %v1147
        %1157 = vmatprep.subr.bf16.mxu0 0
        %1158 = vmatpush1.bf16.msra.mxu0 0
        %1159 = vmatprep.subr.bf16.mxu0 0
        %1160 = vmatpush1.bf16.msra.mxu0 0
        %1161 = vmatprep.subr.bf16.mxu0 0
        %1162 = vmatpush1.bf16.msra.mxu0 0
        %1163 = vmatprep.subr.bf16.mxu0 0
        %1164 = vmatpush1.bf16.msra.mxu0 0
        %1165 = vmatprep.subr.bf16.mxu0 0
        %1166 = vmatpush1.bf16.msra.mxu0 0
        %1167 = vmatprep.subr.bf16.mxu0 0
        %1168 = vmatpush1.bf16.msra.mxu0 0
        %1169 = vmatprep.subr.bf16.mxu0 0
        %1170 = vmatpush1.bf16.msra.mxu0 0
        %1171 = vmatprep.subr.bf16.mxu0 0
        %1172 = vmatpush1.bf16.msra.mxu0 0
        %1173 = vmatprep.subr.bf16.mxu0 0
        %1174 = vmatpush1.bf16.msra.mxu0 0
        %1175 = vmatprep.subr.bf16.mxu0 0
        %1176 = vmatpush1.bf16.msra.mxu0 0
        %1177 = vmatprep.subr.bf16.mxu0 0
        %1178 = vmatpush1.bf16.msra.mxu0 0
        %1179 = vmatprep.subr.bf16.mxu0 0
        %1180 = vmatpush1.bf16.msra.mxu0 0
        %1181 = vmatprep.subr.bf16.mxu0 0
        %1182 = vmatpush1.bf16.msra.mxu0 0
        %1183 = vmatprep.subr.bf16.mxu0 0
        %1184 = vmatpush1.bf16.msra.mxu0 0
        %1185 = vmatprep.mubr.bf16.mxu0 0
        %1186 = vmatmul.mubr.bf16.gmra.mrb[0].mxu0 %v1151
        %v1187 = vpop.f32.mrb[0].mxu0
        %v1188 = vadd.f32 %v1136, %v1187
        %v1189 = vpop.f32.mrb[0].mxu0
        %v1190 = vpop.f32.mrb[0].mxu0
        %v1191 = vpop.f32.mrb[0].mxu0
        %1192 = vdwg.mxu0
        %v1193 = vmul.f32 %v1188, 1.702
        %v1194 = vxor.u32 %v1193, 2147483648
        %v1195 = vmul.f32 %v1194, 1.442695
        %v1196 = vpow.pop %v1195
        %v1197 = vadd.f32 %v1196, 1.0
        %v1198 = vrcp.pop %v1197
        %v1199 = vmul.f32 1.0, %v1198
        %v1200 = vmul.f32 %v1188, %v1199
        %v1201 = vld [vmem:[%s11] sm:$0xf]
        %v1202 = vld [vmem:[%s11 + $0x4] sm:$0xf]
        %v1203 = vld [vmem:[%s11 + $0x8] sm:$0xf]
        %v1204 = vld [vmem:[%s11 + $0xc] sm:$0xf]
        %v1205 = vld [vmem:[%s11 + $0x10] sm:$0xf]
        %v1206 = vld [vmem:[%s11 + $0x14] sm:$0xf]
        %v1207 = vld [vmem:[%s11 + $0x18] sm:$0xf]
        %v1208 = vld [vmem:[%s11 + $0x1c] sm:$0xf]
        %v1209 = vld [vmem:[%s11 + $0x20] sm:$0xf]
        %v1210 = vld [vmem:[%s11 + $0x24] sm:$0xf]
        %v1211 = vld [vmem:[%s11 + $0x28] sm:$0xf]
        %v1212 = vld [vmem:[%s11 + $0x2c] sm:$0xf]
        %v1213 = vld [vmem:[%s11 + $0x30] sm:$0xf]
        %v1214 = vld [vmem:[%s11 + $0x34] sm:$0xf]
        %v1215 = vld [vmem:[%s11 + $0x38] sm:$0xf]
        %v1216 = vld [vmem:[%s11 + $0x3c] sm:$0xf]
        %v1217 = vpack.c.bf16 %v1200, %v1200
        %v1218 = vld [vmem:[%s12] sm:$0x1]
        %v1220 = vlaneseq
        %v1221 = vshrl.u32 %v1220, 7
        %v1222 = vsub.s32 0, %v1221
        %v1223 = vrot.slane %v1218, %v1222
        %v1241 = vunpack.c.l.b16 %v1201
        %v1242 = vunpack.c.l.b16 %v1202
        %v1243 = vunpack.c.l.b16 %v1203
        %v1244 = vunpack.c.l.b16 %v1204
        %v1245 = vunpack.c.l.b16 %v1205
        %v1246 = vunpack.c.l.b16 %v1206
        %v1247 = vunpack.c.l.b16 %v1207
        %v1248 = vunpack.c.l.b16 %v1208
        %v1249 = vunpack.c.l.b16 %v1209
        %v1250 = vunpack.c.l.b16 %v1210
        %v1251 = vunpack.c.l.b16 %v1211
        %v1252 = vunpack.c.l.b16 %v1212
        %v1253 = vunpack.c.l.b16 %v1213
        %v1254 = vunpack.c.l.b16 %v1214
        %v1255 = vunpack.c.l.b16 %v1215
        %v1256 = vunpack.c.l.b16 %v1216
        %v1257 = vpack.c.b16 %v1242, %v1241
        %v1258 = vpack.c.b16 %v1244, %v1243
        %v1259 = vpack.c.b16 %v1246, %v1245
        %v1260 = vpack.c.b16 %v1248, %v1247
        %v1261 = vpack.c.b16 %v1250, %v1249
        %v1262 = vpack.c.b16 %v1252, %v1251
        %v1263 = vpack.c.b16 %v1254, %v1253
        %v1264 = vpack.c.b16 %v1256, %v1255
        %1273 = vmatprep.subr.bf16.mxu0 0
        %1274 = vmatpush1.bf16.msra.mxu0 %v1257
        %1275 = vmatprep.subr.bf16.mxu0 0
        %1276 = vmatpush1.bf16.msra.mxu0 %v1258
        %1277 = vmatprep.subr.bf16.mxu0 0
        %1278 = vmatpush1.bf16.msra.mxu0 %v1259
        %1279 = vmatprep.subr.bf16.mxu0 0
        %1280 = vmatpush1.bf16.msra.mxu0 %v1260
        %1281 = vmatprep.subr.bf16.mxu0 0
        %1282 = vmatpush1.bf16.msra.mxu0 %v1261
        %1283 = vmatprep.subr.bf16.mxu0 0
        %1284 = vmatpush1.bf16.msra.mxu0 %v1262
        %1285 = vmatprep.subr.bf16.mxu0 0
        %1286 = vmatpush1.bf16.msra.mxu0 %v1263
        %1287 = vmatprep.subr.bf16.mxu0 0
        %1288 = vmatpush1.bf16.msra.mxu0 %v1264
        %1289 = vmatprep.subr.bf16.mxu0 0
        %1290 = vmatpush1.bf16.msra.mxu0 0
        %1291 = vmatprep.subr.bf16.mxu0 0
        %1292 = vmatpush1.bf16.msra.mxu0 0
        %1293 = vmatprep.subr.bf16.mxu0 0
        %1294 = vmatpush1.bf16.msra.mxu0 0
        %1295 = vmatprep.subr.bf16.mxu0 0
        %1296 = vmatpush1.bf16.msra.mxu0 0
        %1297 = vmatprep.subr.bf16.mxu0 0
        %1298 = vmatpush1.bf16.msra.mxu0 0
        %1299 = vmatprep.subr.bf16.mxu0 0
        %1300 = vmatpush1.bf16.msra.mxu0 0
        %1301 = vmatprep.subr.bf16.mxu0 0
        %1302 = vmatpush1.bf16.msra.mxu0 0
        %1303 = vmatprep.subr.bf16.mxu0 0
        %1304 = vmatpush1.bf16.msra.mxu0 0
        %1305 = vmatprep.mubr.bf16.mxu0 0
        %1306 = vmatmul.mubr.bf16.gmra.mrb[0].mxu0 %v1217
        %v1307 = vpop.f32.mrb[0].mxu0
        %v1308 = vadd.f32 %v1223, %v1307
        %v1309 = vpop.f32.mrb[0].mxu0
        %v1310 = vpop.f32.mrb[0].mxu0
        %v1311 = vpop.f32.mrb[0].mxu0
        %1312 = vdwg.mxu0
        %v1313 = vadd.f32 %v1094, %v1308
        %1314 = vst.msk [vmem:[%s431] sm:$0xff] %vm440, %v1313
        %s1315 = sand.u32 %s313, 1
        %s1316 = scalar_lea.sflag [#allocation5], %s1315
        %s1317 = sand.u32 %s313, 1
        %s1318 = smul.addr %s1317, 8
        %s1319 = scalar_lea.vmem [#allocation4], %s1318
        // Predicated region
        $region73: #{clip_layer.1} parent=71 // pred_check
          %p1320 = pneg %p323
        $region74: #{clip_layer.1} parent=71 // pred_check_branch
          %1322 = sbr.rel (%p1320) target = $region76
        $region75: #{clip_layer.1} parent=71 // pred_region
          %s1324 = ssub.s32 128, 128
          %1325 = vsyncadd %s1316, %s1324
          %s1326 = smul.addr %s27, 128
          %s1327 = scalar_lea.hbm %s13, %s1326
          %s1329 = sshll.u32 %s1319, 4
          %s1330 = int_to_ptr.vmem [resolvable:$true] %s1329
          %1332 = dma.vmem_to_hbm [thread:$0]  %s1330, 128, %s1327, %s1316
        $region76: #{clip_layer.1} parent=71 // pred_fallthru
          _
      $region72: #{clip_layer.1} parent=5 // pred_fallthru
        _
      %p1333 = scmp.le.s32.totalorder 2, %s22
      // Predicated region
      $region77: #{clip_layer.1} parent=5 // pred_check
        %p1334 = pneg %p1333
      $region78: #{clip_layer.1} parent=5 // pred_check_branch
        %1336 = sbr.rel (%p1334) target = $region80
      $region79: #{clip_layer.1} parent=5 // pred_region
        %s1337 = ssub.s32 %s22, 2
        // Predicated region
        $region81: #{clip_layer.1} parent=79 // pred_check
          %p1338 = pneg %p329
        $region82: #{clip_layer.1} parent=79 // pred_check_branch
          %1340 = sbr.rel (%p1338) target = $region84
        $region83: #{clip_layer.1} parent=79 // pred_region
          %s1341 = sand.u32 %s314, 1
          %s1342 = scalar_lea.sflag [#allocation5], %s1341
          %s1343 = sand.u32 %s314, 1
          %s1344 = smul.addr %s1343, 8
          %s1345 = scalar_lea.vmem [#allocation4], %s1344
          %1346 = dma.done %s1342, 128
        $region84: #{clip_layer.1} parent=79 // pred_fallthru
          _
      $region80: #{clip_layer.1} parent=5 // pred_fallthru
        _
    $region6: #{clip_layer.1} parent=1 // loop_footer
      %s26 = sadd.s32 1, %s22
    $region7: #{clip_layer.1} parent=1 // loop_footer_branch
      %21 = sbr.rel target = $region3
    $region8: #{clip_layer.1} parent=1 // loop_exit
      _
    %1347 = vsyncpa [#allocation5], 1
    %s1348 = scalar_lea.sflag [#allocation5], 1
    %1349 = vsyncpa %s1348, 1

</llo_original>
